<compile_context>
chip_gen: v7x
topology: tpu7x:2x2x1
jax: 0.10.0
libtpu: 0.0.40
codegen_flags: <defaults>
</compile_context>

<pallas_src>
import functools

import jax
import jax.numpy as jnp
from jax.experimental import pallas as pl
from jax.experimental.pallas import tpu as pltpu

LN_EPS = 1e-5                       # nn.LayerNorm default eps
_INV_SQRT2 = 0.7071067811865476


# ---------------------------------------------------------------------------
# in-kernel math helpers (all f32)
# ---------------------------------------------------------------------------
def _layernorm(x, w, b):
    mu = jnp.mean(x, axis=-1, keepdims=True)
    var = jnp.mean((x - mu) ** 2, axis=-1, keepdims=True)   # biased, like torch
    return (x - mu) * jax.lax.rsqrt(var + LN_EPS) * w + b


def _gelu_exact(x):                 # nn.GELU default (erf based)
    return 0.5 * x * (1.0 + jax.lax.erf(x * _INV_SQRT2))


def _softmax_lastdim(x):            # softmax over channels (per token)
    m = jnp.max(x, axis=-1, keepdims=True)
    e = jnp.exp(x - m)
    return e / jnp.sum(e, axis=-1, keepdims=True)


def _softmax_seq(x):                # softmax over the sequence dim (axis 0)
    m = jnp.max(x, axis=0, keepdims=True)
    e = jnp.exp(x - m)
    return e / jnp.sum(e, axis=0, keepdims=True)


# ---------------------------------------------------------------------------
# fused kernel: one grid step == one batch element, everything stays in VMEM
# ---------------------------------------------------------------------------
def _cab_kernel(x1_ref, x2_ref,
                ln1_w_ref, ln1_b_ref,
                rp_w_ref, rp_b_ref,
                an_w_ref, an_b_ref,
                ln2_w_ref, ln2_b_ref,
                fc1_w_ref, fc1_b_ref,
                fc2_w_ref, fc2_b_ref,
                o_ref, *,
                head_count, key_channels, value_channels):
    f32 = jnp.float32
    x1 = x1_ref[0].astype(f32)                     # (N, D)  values stream
    x2 = x2_ref[0].astype(f32)                     # (N, D)  keys/queries stream
    _, d = x1.shape

    # norm1 (shared params) applied to both streams -- per-token LN over D.
    a1 = _layernorm(x1, ln1_w_ref[...], ln1_b_ref[...])
    a2 = _layernorm(x2, ln1_w_ref[...], ln1_b_ref[...])

    hkc = key_channels // head_count
    hvc = value_channels // head_count

    # efficient (linear) cross attention, channels-last the whole way.
    aggregated = None                              # (N, value_channels)
    for i in range(head_count):                    # static unroll (tiny count)
        kq = a2[:, i * hkc:(i + 1) * hkc]          # (N, hkc) no-op for 1 head
        v = a1[:, i * hvc:(i + 1) * hvc]           # (N, hvc)

        key = _softmax_seq(kq)                     # torch: softmax(keys, dim=2)
        query = _softmax_lastdim(kq)               # torch: softmax(queries, dim=1)

        # context[k, v] = sum_n key[n, k] * value[n, v]  -> (hkc, hvc) on MXU
        context = jax.lax.dot_general(
            key, v, (((0,), (0,)), ((), ())), preferred_element_type=f32)
        # attended[n, v] = sum_k query[n, k] * context[k, v]
        attended = jnp.dot(query, context, preferred_element_type=f32)

        if head_count == 1:
            aggregated = attended
        else:
            # scatter this head's channels into their slot via a one-hot
            # selector matmul (avoids unaligned lane-dim concatenation).
            r = jax.lax.broadcasted_iota(jnp.int32, (hvc, value_channels), 0)
            c = jax.lax.broadcasted_iota(jnp.int32, (hvc, value_channels), 1)
            sel = (c == r + i * hvc).astype(f32)
            part = jnp.dot(attended, sel, preferred_element_type=f32)
            aggregated = part if aggregated is None else aggregated + part

    # 1x1 reprojection conv == per-token matmul D -> 2D, then LayerNorm(2D).
    rep = jnp.dot(aggregated, rp_w_ref[...], preferred_element_type=f32)
    rep = rep + rp_b_ref[...]
    attn = _layernorm(rep, an_w_ref[...], an_b_ref[...])            # (N, 2D)

    # residual = torch.cat([x1, x2], dim=2), built with exact one-hot selector
    # matmuls (each output element is x*1.0 plus zeros -> bit-exact).
    r = jax.lax.broadcasted_iota(jnp.int32, (d, 2 * d), 0)
    c = jax.lax.broadcasted_iota(jnp.int32, (d, 2 * d), 1)
    e1 = (c == r).astype(f32)
    e2 = (c == r + d).astype(f32)
    residual = (jnp.dot(x1, e1, preferred_element_type=f32)
                + jnp.dot(x2, e2, preferred_element_type=f32))

    tx = residual + attn                                            # (N, 2D)

    # MLP_FFN on norm2(tx): fc1 -> exact GELU -> fc2, plus the skip.
    t = _layernorm(tx, ln2_w_ref[...], ln2_b_ref[...])
    h = jnp.dot(t, fc1_w_ref[...], preferred_element_type=f32) + fc1_b_ref[...]
    h = _gelu_exact(h)
    m = jnp.dot(h, fc2_w_ref[...], preferred_element_type=f32) + fc2_b_ref[...]

    o_ref[0] = (tx + m).astype(o_ref.dtype)


# ---------------------------------------------------------------------------
# wrapper: one pallas_call for the whole block
# ---------------------------------------------------------------------------
def cross_attention_block(params, x1, x2, height, width, *,
                          key_dim, value_dim, head_count=1):
    B, N, D = x1.shape
    assert x2.shape == (B, N, D)
    assert N == height * width, "N must equal H*W"
    assert value_dim == D, "value_dim must equal token dim D (torch reshape)"
    two_d = 2 * D
    dh = params["fc1_w"].shape[0]
    f32 = jnp.float32

    ln1_w = params["norm1_w"].reshape(1, D).astype(f32)
    ln1_b = params["norm1_b"].reshape(1, D).astype(f32)
    rp_w = params["reproj_w"].reshape(2 * value_dim, value_dim).T.astype(f32)
    rp_b = params["reproj_b"].reshape(1, 2 * value_dim).astype(f32)
    an_w = params["attn_norm_w"].reshape(1, 2 * value_dim).astype(f32)
    an_b = params["attn_norm_b"].reshape(1, 2 * value_dim).astype(f32)
    ln2_w = params["norm2_w"].reshape(1, two_d).astype(f32)
    ln2_b = params["norm2_b"].reshape(1, two_d).astype(f32)
    fc1_w = params["fc1_w"].T.astype(f32)            # (2D, Dh)
    fc1_b = params["fc1_b"].reshape(1, dh).astype(f32)
    fc2_w = params["fc2_w"].T.astype(f32)            # (Dh, 2D)
    fc2_b = params["fc2_b"].reshape(1, two_d).astype(f32)

    kernel = functools.partial(_cab_kernel, head_count=head_count,
                               key_channels=key_dim, value_channels=value_dim)

    def batch_spec(shape):
        return pl.BlockSpec(shape, lambda b: (b, 0, 0))

    def const_spec(shape):
        return pl.BlockSpec(shape, lambda b: (0,) * len(shape))

    return pl.pallas_call(
        kernel,
        out_shape=jax.ShapeDtypeStruct((B, N, two_d), jnp.float32),
        grid=(B,),
        in_specs=[
            batch_spec((1, N, D)), batch_spec((1, N, D)),
            const_spec((1, D)), const_spec((1, D)),
            const_spec((D, 2 * value_dim)), const_spec((1, 2 * value_dim)),
            const_spec((1, 2 * value_dim)), const_spec((1, 2 * value_dim)),
            const_spec((1, two_d)), const_spec((1, two_d)),
            const_spec((two_d, dh)), const_spec((1, dh)),
            const_spec((dh, two_d)), const_spec((1, two_d)),
        ],
        out_specs=pl.BlockSpec((1, N, two_d), lambda b: (b, 0, 0)),
        compiler_params=pltpu.CompilerParams(
            dimension_semantics=("parallel",)),
    )(x1, x2, ln1_w, ln1_b, rp_w, rp_b, an_w, an_b, ln2_w, ln2_b,
      fc1_w, fc1_b, fc2_w, fc2_b)


# ---------------------------------------------------------------------------
# pure-JAX reference (mirrors the PyTorch forward exactly) for validation
# ---------------------------------------------------------------------------
def reference_forward(params, x1, x2, height, width, *,
                      key_dim, value_dim, head_count=1):
    def ln(x, w, b):
        mu = jnp.mean(x, axis=-1, keepdims=True)
        var = jnp.mean((x - mu) ** 2, axis=-1, keepdims=True)
        return (x - mu) / jnp.sqrt(var + LN_EPS) * w + b

    B, N, D = x1.shape
    with jax.default_matmul_precision("highest"):
        n1 = ln(x1, params["norm1_w"], params["norm1_b"])
        n2 = ln(x2, params["norm1_w"], params["norm1_b"])
        keys = jnp.swapaxes(n2, 1, 2)          # (B, D, N)
        queries = keys
        values = jnp.swapaxes(n1, 1, 2)
        hkc = key_dim // head_count
        hvc = value_dim // head_count
        heads = []
        for i in range(head_count):
            key = jax.nn.softmax(keys[:, i * hkc:(i + 1) * hkc, :], axis=2)
            query = jax.nn.softmax(queries[:, i * hkc:(i + 1) * hkc, :], axis=1)
            value = values[:, i * hvc:(i + 1) * hvc, :]
            context = jnp.einsum("bkn,bvn->bkv", key, value)
            attended = jnp.einsum("bkv,bkn->bvn", context, query)
            heads.append(attended)
        agg = jnp.concatenate(heads, axis=1).reshape(B, D, height, width)
        w = params["reproj_w"].reshape(2 * value_dim, value_dim)
        rep = (jnp.einsum("od,bdhw->bohw", w, agg)
               + params["reproj_b"][None, :, None, None])
        rep = rep.reshape(B, 2 * D, N).transpose(0, 2, 1)
        rep = ln(rep, params["attn_norm_w"], params["attn_norm_b"])
        residual = jnp.concatenate([x1, x2], axis=2)
        tx = residual + rep
        t = ln(tx, params["norm2_w"], params["norm2_b"])
        h = t @ params["fc1_w"].T + params["fc1_b"]
        h = 0.5 * h * (1.0 + jax.lax.erf(h * _INV_SQRT2))
        m = h @ params["fc2_w"].T + params["fc2_b"]
        return tx + m


# ---------------------------------------------------------------------------
# deterministic parameter init
# ---------------------------------------------------------------------------
def init_params(key, *, in_dim, value_dim):
    two_d = 2 * in_dim
    dh = 4 * in_dim
    ks = jax.random.split(key, 12)

    def uni(k, shape, bound):
        return jax.random.uniform(k, shape, jnp.float32, -bound, bound)

    rp_b = 1.0 / (value_dim ** 0.5)
    f1_b = 1.0 / (two_d ** 0.5)
    f2_b = 1.0 / (dh ** 0.5)
    # LN affines are randomly perturbed (instead of torch's ones/zeros default)
    # so the kernel's affine path is actually exercised by the check.
    return {
        "norm1_w": 1.0 + 0.1 * jax.random.normal(ks[0], (in_dim,), jnp.float32),
        "norm1_b": 0.1 * jax.random.normal(ks[1], (in_dim,), jnp.float32),
        "attn_norm_w": 1.0 + 0.1 * jax.random.normal(ks[2], (2 * value_dim,), jnp.float32),
        "attn_norm_b": 0.1 * jax.random.normal(ks[3], (2 * value_dim,), jnp.float32),
        "norm2_w": 1.0 + 0.1 * jax.random.normal(ks[4], (two_d,), jnp.float32),
        "norm2_b": 0.1 * jax.random.normal(ks[5], (two_d,), jnp.float32),
        "reproj_w": uni(ks[6], (2 * value_dim, value_dim, 1, 1), rp_b),
        "reproj_b": uni(ks[7], (2 * value_dim,), rp_b),
        "fc1_w": uni(ks[8], (dh, two_d), f1_b),
        "fc1_b": uni(ks[9], (dh,), f1_b),
        "fc2_w": uni(ks[10], (two_d, dh), f2_b),
        "fc2_b": uni(ks[11], (two_d,), f2_b),
    }


if __name__ == "__main__":
    B, H, W, D = 2, 8, 8, 32          # N = H*W = 64 tokens, in_dim = 32
    N = H * W
    HEADS = 1                         # module default

    root = jax.random.PRNGKey(0)
    kp, k1, k2 = jax.random.split(root, 3)
    params = init_params(kp, in_dim=D, value_dim=D)
    x1 = jax.random.normal(k1, (B, N, D), jnp.float32)
    x2 = jax.random.normal(k2, (B, N, D), jnp.float32)

    out = cross_attention_block(params, x1, x2, H, W,
                                key_dim=D, value_dim=D, head_count=HEADS)
    out = jax.block_until_ready(out)

    assert out.shape == (B, N, 2 * D), out.shape
    assert bool(jnp.all(jnp.isfinite(out)))

    ref = reference_forward(params, x1, x2, H, W,
                            key_dim=D, value_dim=D, head_count=HEADS)
    max_err = float(jnp.max(jnp.abs(out - ref)))
    assert max_err < 1e-1, f"max abs err vs reference: {max_err}"
    print("KERNEL_OK")
</pallas_src>

<mosaic_0001>
module attributes {stable_mosaic.version = 11 : i64} {
  func.func @_cab_kernel(%arg0: i32, %arg1: memref<1x64x32xf32, #tpu.memory_space<vmem>>, %arg2: memref<1x64x32xf32, #tpu.memory_space<vmem>>, %arg3: memref<1x32xf32, #tpu.memory_space<vmem>>, %arg4: memref<1x32xf32, #tpu.memory_space<vmem>>, %arg5: memref<32x64xf32, #tpu.memory_space<vmem>>, %arg6: memref<1x64xf32, #tpu.memory_space<vmem>>, %arg7: memref<1x64xf32, #tpu.memory_space<vmem>>, %arg8: memref<1x64xf32, #tpu.memory_space<vmem>>, %arg9: memref<1x64xf32, #tpu.memory_space<vmem>>, %arg10: memref<1x64xf32, #tpu.memory_space<vmem>>, %arg11: memref<64x128xf32, #tpu.memory_space<vmem>>, %arg12: memref<1x128xf32, #tpu.memory_space<vmem>>, %arg13: memref<128x64xf32, #tpu.memory_space<vmem>>, %arg14: memref<1x64xf32, #tpu.memory_space<vmem>>, %arg15: memref<1x64x64xf32, #tpu.memory_space<vmem>>) attributes {dimension_semantics = [#tpu.dimension_semantics<parallel>], iteration_bounds = array<i64: 2>, scalar_prefetch = 0 : i64, scratch_operands = 0 : i64, tpu.core_type = #tpu.core_type<tc>, window_params = [{transform_indices = @transform_0, window_bounds = array<i64: 1, 64, 32>}, {transform_indices = @transform_1, window_bounds = array<i64: 1, 64, 32>}, {pipeline_mode = #tpu.pipeline_mode<synchronous>, transform_indices = @transform_2, window_bounds = array<i64: 1, 32>}, {pipeline_mode = #tpu.pipeline_mode<synchronous>, transform_indices = @transform_3, window_bounds = array<i64: 1, 32>}, {pipeline_mode = #tpu.pipeline_mode<synchronous>, transform_indices = @transform_4, window_bounds = array<i64: 32, 64>}, {pipeline_mode = #tpu.pipeline_mode<synchronous>, transform_indices = @transform_5, window_bounds = array<i64: 1, 64>}, {pipeline_mode = #tpu.pipeline_mode<synchronous>, transform_indices = @transform_6, window_bounds = array<i64: 1, 64>}, {pipeline_mode = #tpu.pipeline_mode<synchronous>, transform_indices = @transform_7, window_bounds = array<i64: 1, 64>}, {pipeline_mode = #tpu.pipeline_mode<synchronous>, transform_indices = @transform_8, window_bounds = array<i64: 1, 64>}, {pipeline_mode = #tpu.pipeline_mode<synchronous>, transform_indices = @transform_9, window_bounds = array<i64: 1, 64>}, {pipeline_mode = #tpu.pipeline_mode<synchronous>, transform_indices = @transform_10, window_bounds = array<i64: 64, 128>}, {pipeline_mode = #tpu.pipeline_mode<synchronous>, transform_indices = @transform_11, window_bounds = array<i64: 1, 128>}, {pipeline_mode = #tpu.pipeline_mode<synchronous>, transform_indices = @transform_12, window_bounds = array<i64: 128, 64>}, {pipeline_mode = #tpu.pipeline_mode<synchronous>, transform_indices = @transform_13, window_bounds = array<i64: 1, 64>}, {transform_indices = @transform_14, window_bounds = array<i64: 1, 64, 64>}]} {
    %c0 = arith.constant 0 : index
    %c0_0 = arith.constant 0 : index
    %c0_1 = arith.constant 0 : index
    %0 = vector.load %arg1[%c0, %c0_0, %c0_1] : memref<1x64x32xf32, #tpu.memory_space<vmem>>, vector<1x64x32xf32>
    %1 = vector.shape_cast %0 : vector<1x64x32xf32> to vector<64x32xf32>
    %c0_2 = arith.constant 0 : index
    %c0_3 = arith.constant 0 : index
    %c0_4 = arith.constant 0 : index
    %2 = vector.load %arg2[%c0_2, %c0_3, %c0_4] : memref<1x64x32xf32, #tpu.memory_space<vmem>>, vector<1x64x32xf32>
    %3 = vector.shape_cast %2 : vector<1x64x32xf32> to vector<64x32xf32>
    %c0_5 = arith.constant 0 : index
    %c0_6 = arith.constant 0 : index
    %4 = vector.load %arg3[%c0_5, %c0_6] : memref<1x32xf32, #tpu.memory_space<vmem>>, vector<1x32xf32>
    %c0_7 = arith.constant 0 : index
    %c0_8 = arith.constant 0 : index
    %5 = vector.load %arg4[%c0_7, %c0_8] : memref<1x32xf32, #tpu.memory_space<vmem>>, vector<1x32xf32>
    %cst = arith.constant dense<0.000000e+00> : vector<64xf32>
    %6 = vector.multi_reduction <add>, %1, %cst [1] : vector<64x32xf32> to vector<64xf32>
    %7 = vector.shape_cast %6 : vector<64xf32> to vector<64x1xf32>
    %cst_9 = arith.constant 3.200000e+01 : f32
    %8 = vector.broadcast %cst_9 : f32 to vector<64x1xf32>
    %9 = arith.divf %7, %8 : vector<64x1xf32>
    %10 = vector.broadcast %9 : vector<64x1xf32> to vector<64x32xf32>
    %11 = arith.subf %1, %10 : vector<64x32xf32>
    %12 = arith.mulf %11, %11 : vector<64x32xf32>
    %cst_10 = arith.constant dense<0.000000e+00> : vector<64xf32>
    %13 = vector.multi_reduction <add>, %12, %cst_10 [1] : vector<64x32xf32> to vector<64xf32>
    %14 = vector.shape_cast %13 : vector<64xf32> to vector<64x1xf32>
    %cst_11 = arith.constant 3.200000e+01 : f32
    %15 = vector.broadcast %cst_11 : f32 to vector<64x1xf32>
    %16 = arith.divf %14, %15 : vector<64x1xf32>
    %17 = vector.broadcast %9 : vector<64x1xf32> to vector<64x32xf32>
    %18 = arith.subf %1, %17 : vector<64x32xf32>
    %cst_12 = arith.constant 9.99999974E-6 : f32
    %19 = vector.broadcast %cst_12 : f32 to vector<64x1xf32>
    %20 = arith.addf %16, %19 : vector<64x1xf32>
    %21 = math.rsqrt %20 : vector<64x1xf32>
    %22 = vector.broadcast %21 : vector<64x1xf32> to vector<64x32xf32>
    %23 = arith.mulf %18, %22 : vector<64x32xf32>
    %24 = vector.broadcast %4 : vector<1x32xf32> to vector<64x32xf32>
    %25 = arith.mulf %23, %24 : vector<64x32xf32>
    %26 = vector.broadcast %5 : vector<1x32xf32> to vector<64x32xf32>
    %27 = arith.addf %25, %26 : vector<64x32xf32>
    %c0_13 = arith.constant 0 : index
    %c0_14 = arith.constant 0 : index
    %28 = vector.load %arg3[%c0_13, %c0_14] : memref<1x32xf32, #tpu.memory_space<vmem>>, vector<1x32xf32>
    %c0_15 = arith.constant 0 : index
    %c0_16 = arith.constant 0 : index
    %29 = vector.load %arg4[%c0_15, %c0_16] : memref<1x32xf32, #tpu.memory_space<vmem>>, vector<1x32xf32>
    %cst_17 = arith.constant dense<0.000000e+00> : vector<64xf32>
    %30 = vector.multi_reduction <add>, %3, %cst_17 [1] : vector<64x32xf32> to vector<64xf32>
    %31 = vector.shape_cast %30 : vector<64xf32> to vector<64x1xf32>
    %cst_18 = arith.constant 3.200000e+01 : f32
    %32 = vector.broadcast %cst_18 : f32 to vector<64x1xf32>
    %33 = arith.divf %31, %32 : vector<64x1xf32>
    %34 = vector.broadcast %33 : vector<64x1xf32> to vector<64x32xf32>
    %35 = arith.subf %3, %34 : vector<64x32xf32>
    %36 = arith.mulf %35, %35 : vector<64x32xf32>
    %cst_19 = arith.constant dense<0.000000e+00> : vector<64xf32>
    %37 = vector.multi_reduction <add>, %36, %cst_19 [1] : vector<64x32xf32> to vector<64xf32>
    %38 = vector.shape_cast %37 : vector<64xf32> to vector<64x1xf32>
    %cst_20 = arith.constant 3.200000e+01 : f32
    %39 = vector.broadcast %cst_20 : f32 to vector<64x1xf32>
    %40 = arith.divf %38, %39 : vector<64x1xf32>
    %41 = vector.broadcast %33 : vector<64x1xf32> to vector<64x32xf32>
    %42 = arith.subf %3, %41 : vector<64x32xf32>
    %cst_21 = arith.constant 9.99999974E-6 : f32
    %43 = vector.broadcast %cst_21 : f32 to vector<64x1xf32>
    %44 = arith.addf %40, %43 : vector<64x1xf32>
    %45 = math.rsqrt %44 : vector<64x1xf32>
    %46 = vector.broadcast %45 : vector<64x1xf32> to vector<64x32xf32>
    %47 = arith.mulf %42, %46 : vector<64x32xf32>
    %48 = vector.broadcast %28 : vector<1x32xf32> to vector<64x32xf32>
    %49 = arith.mulf %47, %48 : vector<64x32xf32>
    %50 = vector.broadcast %29 : vector<1x32xf32> to vector<64x32xf32>
    %51 = arith.addf %49, %50 : vector<64x32xf32>
    %cst_22 = arith.constant dense<0xFF800000> : vector<32xf32>
    %52 = vector.multi_reduction <maximumf>, %51, %cst_22 [0] : vector<64x32xf32> to vector<32xf32>
    %53 = vector.shape_cast %52 : vector<32xf32> to vector<1x32xf32>
    %54 = vector.broadcast %53 : vector<1x32xf32> to vector<64x32xf32>
    %55 = arith.subf %51, %54 : vector<64x32xf32>
    %56 = math.exp %55 : vector<64x32xf32>
    %cst_23 = arith.constant dense<0.000000e+00> : vector<32xf32>
    %57 = vector.multi_reduction <add>, %56, %cst_23 [0] : vector<64x32xf32> to vector<32xf32>
    %58 = vector.shape_cast %57 : vector<32xf32> to vector<1x32xf32>
    %59 = vector.broadcast %58 : vector<1x32xf32> to vector<64x32xf32>
    %60 = arith.divf %56, %59 : vector<64x32xf32>
    %cst_24 = arith.constant dense<0xFF800000> : vector<64xf32>
    %61 = vector.multi_reduction <maximumf>, %51, %cst_24 [1] : vector<64x32xf32> to vector<64xf32>
    %62 = vector.shape_cast %61 : vector<64xf32> to vector<64x1xf32>
    %63 = vector.broadcast %62 : vector<64x1xf32> to vector<64x32xf32>
    %64 = arith.subf %51, %63 : vector<64x32xf32>
    %65 = math.exp %64 : vector<64x32xf32>
    %cst_25 = arith.constant dense<0.000000e+00> : vector<64xf32>
    %66 = vector.multi_reduction <add>, %65, %cst_25 [1] : vector<64x32xf32> to vector<64xf32>
    %67 = vector.shape_cast %66 : vector<64xf32> to vector<64x1xf32>
    %68 = vector.broadcast %67 : vector<64x1xf32> to vector<64x32xf32>
    %69 = arith.divf %65, %68 : vector<64x32xf32>
    %cst_26 = arith.constant dense<0.000000e+00> : vector<32x32xf32>
    %70 = tpu.matmul %60, %27, %cst_26 {dimension_numbers = #tpu.dot_dimension_numbers<[0], [0], [1], [1], [0, 1, 1, 1], [], []>} : vector<64x32xf32>, vector<64x32xf32>, vector<32x32xf32> -> vector<32x32xf32>
    %cst_27 = arith.constant dense<0.000000e+00> : vector<64x32xf32>
    %71 = tpu.matmul %69, %70, %cst_27 {dimension_numbers = #tpu.dot_dimension_numbers<[1], [0], [0], [1], [0, 0, 1, 1], [], []>} : vector<64x32xf32>, vector<32x32xf32>, vector<64x32xf32> -> vector<64x32xf32>
    %c0_28 = arith.constant 0 : index
    %c0_29 = arith.constant 0 : index
    %72 = vector.load %arg5[%c0_28, %c0_29] : memref<32x64xf32, #tpu.memory_space<vmem>>, vector<32x64xf32>
    %cst_30 = arith.constant dense<0.000000e+00> : vector<64x64xf32>
    %73 = tpu.matmul %71, %72, %cst_30 {dimension_numbers = #tpu.dot_dimension_numbers<[1], [0], [0], [1], [0, 0, 1, 1], [], []>} : vector<64x32xf32>, vector<32x64xf32>, vector<64x64xf32> -> vector<64x64xf32>
    %c0_31 = arith.constant 0 : index
    %c0_32 = arith.constant 0 : index
    %74 = vector.load %arg6[%c0_31, %c0_32] : memref<1x64xf32, #tpu.memory_space<vmem>>, vector<1x64xf32>
    %75 = vector.broadcast %74 : vector<1x64xf32> to vector<64x64xf32>
    %76 = arith.addf %73, %75 : vector<64x64xf32>
    %c0_33 = arith.constant 0 : index
    %c0_34 = arith.constant 0 : index
    %77 = vector.load %arg7[%c0_33, %c0_34] : memref<1x64xf32, #tpu.memory_space<vmem>>, vector<1x64xf32>
    %c0_35 = arith.constant 0 : index
    %c0_36 = arith.constant 0 : index
    %78 = vector.load %arg8[%c0_35, %c0_36] : memref<1x64xf32, #tpu.memory_space<vmem>>, vector<1x64xf32>
    %cst_37 = arith.constant dense<0.000000e+00> : vector<64xf32>
    %79 = vector.multi_reduction <add>, %76, %cst_37 [1] : vector<64x64xf32> to vector<64xf32>
    %80 = vector.shape_cast %79 : vector<64xf32> to vector<64x1xf32>
    %cst_38 = arith.constant 6.400000e+01 : f32
    %81 = vector.broadcast %cst_38 : f32 to vector<64x1xf32>
    %82 = arith.divf %80, %81 : vector<64x1xf32>
    %83 = vector.broadcast %82 : vector<64x1xf32> to vector<64x64xf32>
    %84 = arith.subf %76, %83 : vector<64x64xf32>
    %85 = arith.mulf %84, %84 : vector<64x64xf32>
    %cst_39 = arith.constant dense<0.000000e+00> : vector<64xf32>
    %86 = vector.multi_reduction <add>, %85, %cst_39 [1] : vector<64x64xf32> to vector<64xf32>
    %87 = vector.shape_cast %86 : vector<64xf32> to vector<64x1xf32>
    %cst_40 = arith.constant 6.400000e+01 : f32
    %88 = vector.broadcast %cst_40 : f32 to vector<64x1xf32>
    %89 = arith.divf %87, %88 : vector<64x1xf32>
    %90 = vector.broadcast %82 : vector<64x1xf32> to vector<64x64xf32>
    %91 = arith.subf %76, %90 : vector<64x64xf32>
    %cst_41 = arith.constant 9.99999974E-6 : f32
    %92 = vector.broadcast %cst_41 : f32 to vector<64x1xf32>
    %93 = arith.addf %89, %92 : vector<64x1xf32>
    %94 = math.rsqrt %93 : vector<64x1xf32>
    %95 = vector.broadcast %94 : vector<64x1xf32> to vector<64x64xf32>
    %96 = arith.mulf %91, %95 : vector<64x64xf32>
    %97 = vector.broadcast %77 : vector<1x64xf32> to vector<64x64xf32>
    %98 = arith.mulf %96, %97 : vector<64x64xf32>
    %99 = vector.broadcast %78 : vector<1x64xf32> to vector<64x64xf32>
    %100 = arith.addf %98, %99 : vector<64x64xf32>
    %101 = tpu.iota {dimensions = array<i32: 0>} : vector<32x64xi32>
    %102 = tpu.iota {dimensions = array<i32: 1>} : vector<32x64xi32>
    %103 = arith.cmpi eq, %102, %101 : vector<32x64xi32>
    %104 = arith.extui %103 : vector<32x64xi1> to vector<32x64xi32>
    %105 = arith.sitofp %104 : vector<32x64xi32> to vector<32x64xf32>
    %c32_i32 = arith.constant 32 : i32
    %106 = vector.broadcast %c32_i32 : i32 to vector<32x64xi32>
    %107 = arith.addi %101, %106 : vector<32x64xi32>
    %108 = arith.cmpi eq, %102, %107 : vector<32x64xi32>
    %109 = arith.extui %108 : vector<32x64xi1> to vector<32x64xi32>
    %110 = arith.sitofp %109 : vector<32x64xi32> to vector<32x64xf32>
    %cst_42 = arith.constant dense<0.000000e+00> : vector<64x64xf32>
    %111 = tpu.matmul %1, %105, %cst_42 {dimension_numbers = #tpu.dot_dimension_numbers<[1], [0], [0], [1], [0, 0, 1, 1], [], []>} : vector<64x32xf32>, vector<32x64xf32>, vector<64x64xf32> -> vector<64x64xf32>
    %cst_43 = arith.constant dense<0.000000e+00> : vector<64x64xf32>
    %112 = tpu.matmul %3, %110, %cst_43 {dimension_numbers = #tpu.dot_dimension_numbers<[1], [0], [0], [1], [0, 0, 1, 1], [], []>} : vector<64x32xf32>, vector<32x64xf32>, vector<64x64xf32> -> vector<64x64xf32>
    %113 = arith.addf %111, %112 : vector<64x64xf32>
    %114 = arith.addf %113, %100 : vector<64x64xf32>
    %c0_44 = arith.constant 0 : index
    %c0_45 = arith.constant 0 : index
    %115 = vector.load %arg9[%c0_44, %c0_45] : memref<1x64xf32, #tpu.memory_space<vmem>>, vector<1x64xf32>
    %c0_46 = arith.constant 0 : index
    %c0_47 = arith.constant 0 : index
    %116 = vector.load %arg10[%c0_46, %c0_47] : memref<1x64xf32, #tpu.memory_space<vmem>>, vector<1x64xf32>
    %cst_48 = arith.constant dense<0.000000e+00> : vector<64xf32>
    %117 = vector.multi_reduction <add>, %114, %cst_48 [1] : vector<64x64xf32> to vector<64xf32>
    %118 = vector.shape_cast %117 : vector<64xf32> to vector<64x1xf32>
    %cst_49 = arith.constant 6.400000e+01 : f32
    %119 = vector.broadcast %cst_49 : f32 to vector<64x1xf32>
    %120 = arith.divf %118, %119 : vector<64x1xf32>
    %121 = vector.broadcast %120 : vector<64x1xf32> to vector<64x64xf32>
    %122 = arith.subf %114, %121 : vector<64x64xf32>
    %123 = arith.mulf %122, %122 : vector<64x64xf32>
    %cst_50 = arith.constant dense<0.000000e+00> : vector<64xf32>
    %124 = vector.multi_reduction <add>, %123, %cst_50 [1] : vector<64x64xf32> to vector<64xf32>
    %125 = vector.shape_cast %124 : vector<64xf32> to vector<64x1xf32>
    %cst_51 = arith.constant 6.400000e+01 : f32
    %126 = vector.broadcast %cst_51 : f32 to vector<64x1xf32>
    %127 = arith.divf %125, %126 : vector<64x1xf32>
    %128 = vector.broadcast %120 : vector<64x1xf32> to vector<64x64xf32>
    %129 = arith.subf %114, %128 : vector<64x64xf32>
    %cst_52 = arith.constant 9.99999974E-6 : f32
    %130 = vector.broadcast %cst_52 : f32 to vector<64x1xf32>
    %131 = arith.addf %127, %130 : vector<64x1xf32>
    %132 = math.rsqrt %131 : vector<64x1xf32>
    %133 = vector.broadcast %132 : vector<64x1xf32> to vector<64x64xf32>
    %134 = arith.mulf %129, %133 : vector<64x64xf32>
    %135 = vector.broadcast %115 : vector<1x64xf32> to vector<64x64xf32>
    %136 = arith.mulf %134, %135 : vector<64x64xf32>
    %137 = vector.broadcast %116 : vector<1x64xf32> to vector<64x64xf32>
    %138 = arith.addf %136, %137 : vector<64x64xf32>
    %c0_53 = arith.constant 0 : index
    %c0_54 = arith.constant 0 : index
    %139 = vector.load %arg11[%c0_53, %c0_54] : memref<64x128xf32, #tpu.memory_space<vmem>>, vector<64x128xf32>
    %cst_55 = arith.constant dense<0.000000e+00> : vector<64x128xf32>
    %140 = tpu.matmul %138, %139, %cst_55 {dimension_numbers = #tpu.dot_dimension_numbers<[1], [0], [0], [1], [0, 0, 1, 1], [], []>} : vector<64x64xf32>, vector<64x128xf32>, vector<64x128xf32> -> vector<64x128xf32>
    %c0_56 = arith.constant 0 : index
    %c0_57 = arith.constant 0 : index
    %141 = vector.load %arg12[%c0_56, %c0_57] : memref<1x128xf32, #tpu.memory_space<vmem>>, vector<1x128xf32>
    %142 = vector.broadcast %141 : vector<1x128xf32> to vector<64x128xf32>
    %143 = arith.addf %140, %142 : vector<64x128xf32>
    %cst_58 = arith.constant 5.000000e-01 : f32
    %144 = vector.broadcast %cst_58 : f32 to vector<64x128xf32>
    %145 = arith.mulf %144, %143 : vector<64x128xf32>
    %cst_59 = arith.constant 0.707106769 : f32
    %146 = vector.broadcast %cst_59 : f32 to vector<64x128xf32>
    %147 = arith.mulf %143, %146 : vector<64x128xf32>
    %148 = math.erf %147 : vector<64x128xf32>
    %cst_60 = arith.constant 1.000000e+00 : f32
    %149 = vector.broadcast %cst_60 : f32 to vector<64x128xf32>
    %150 = arith.addf %149, %148 : vector<64x128xf32>
    %151 = arith.mulf %145, %150 : vector<64x128xf32>
    %c0_61 = arith.constant 0 : index
    %c0_62 = arith.constant 0 : index
    %152 = vector.load %arg13[%c0_61, %c0_62] : memref<128x64xf32, #tpu.memory_space<vmem>>, vector<128x64xf32>
    %cst_63 = arith.constant dense<0.000000e+00> : vector<64x64xf32>
    %153 = tpu.matmul %151, %152, %cst_63 {dimension_numbers = #tpu.dot_dimension_numbers<[1], [0], [0], [1], [0, 0, 1, 1], [], []>} : vector<64x128xf32>, vector<128x64xf32>, vector<64x64xf32> -> vector<64x64xf32>
    %c0_64 = arith.constant 0 : index
    %c0_65 = arith.constant 0 : index
    %154 = vector.load %arg14[%c0_64, %c0_65] : memref<1x64xf32, #tpu.memory_space<vmem>>, vector<1x64xf32>
    %155 = vector.broadcast %154 : vector<1x64xf32> to vector<64x64xf32>
    %156 = arith.addf %153, %155 : vector<64x64xf32>
    %157 = arith.addf %114, %156 : vector<64x64xf32>
    %c0_66 = arith.constant 0 : index
    %c0_67 = arith.constant 0 : index
    %c0_68 = arith.constant 0 : index
    %158 = vector.load %arg15[%c0_66, %c0_67, %c0_68] : memref<1x64x64xf32, #tpu.memory_space<vmem>>, vector<1x64x64xf32>
    %159 = vector.shape_cast %158 : vector<1x64x64xf32> to vector<64x64xf32>
    %160 = vector.shape_cast %157 : vector<64x64xf32> to vector<1x64x64xf32>
    tpu.vector_store %arg15[%c0_66, %c0_67, %c0_68], %160 {strides = array<i32>} : memref<1x64x64xf32, #tpu.memory_space<vmem>>, vector<1x64x64xf32>,
    return
  }
  func.func @transform_0(%arg0: i32) -> (i32, i32, i32) {
    %c0_i32 = arith.constant 0 : i32
    %c0_i32_0 = arith.constant 0 : i32
    %c0_i32_1 = arith.constant 0 : i32
    return %arg0, %c0_i32, %c0_i32_0 : i32, i32, i32
  }
  func.func @transform_1(%arg0: i32) -> (i32, i32, i32) {
    %c0_i32 = arith.constant 0 : i32
    %c0_i32_0 = arith.constant 0 : i32
    %c0_i32_1 = arith.constant 0 : i32
    return %arg0, %c0_i32, %c0_i32_0 : i32, i32, i32
  }
  func.func @transform_2(%arg0: i32) -> (i32, i32) {
    %c0_i32 = arith.constant 0 : i32
    %c0_i32_0 = arith.constant 0 : i32
    %c0_i32_1 = arith.constant 0 : i32
    return %c0_i32, %c0_i32_0 : i32, i32
  }
  func.func @transform_3(%arg0: i32) -> (i32, i32) {
    %c0_i32 = arith.constant 0 : i32
    %c0_i32_0 = arith.constant 0 : i32
    %c0_i32_1 = arith.constant 0 : i32
    return %c0_i32, %c0_i32_0 : i32, i32
  }
  func.func @transform_4(%arg0: i32) -> (i32, i32) {
    %c0_i32 = arith.constant 0 : i32
    %c0_i32_0 = arith.constant 0 : i32
    %c0_i32_1 = arith.constant 0 : i32
    return %c0_i32, %c0_i32_0 : i32, i32
  }
  func.func @transform_5(%arg0: i32) -> (i32, i32) {
    %c0_i32 = arith.constant 0 : i32
    %c0_i32_0 = arith.constant 0 : i32
    %c0_i32_1 = arith.constant 0 : i32
    return %c0_i32, %c0_i32_0 : i32, i32
  }
  func.func @transform_6(%arg0: i32) -> (i32, i32) {
    %c0_i32 = arith.constant 0 : i32
    %c0_i32_0 = arith.constant 0 : i32
    %c0_i32_1 = arith.constant 0 : i32
    return %c0_i32, %c0_i32_0 : i32, i32
  }
  func.func @transform_7(%arg0: i32) -> (i32, i32) {
    %c0_i32 = arith.constant 0 : i32
    %c0_i32_0 = arith.constant 0 : i32
    %c0_i32_1 = arith.constant 0 : i32
    return %c0_i32, %c0_i32_0 : i32, i32
  }
  func.func @transform_8(%arg0: i32) -> (i32, i32) {
    %c0_i32 = arith.constant 0 : i32
    %c0_i32_0 = arith.constant 0 : i32
    %c0_i32_1 = arith.constant 0 : i32
    return %c0_i32, %c0_i32_0 : i32, i32
  }
  func.func @transform_9(%arg0: i32) -> (i32, i32) {
    %c0_i32 = arith.constant 0 : i32
    %c0_i32_0 = arith.constant 0 : i32
    %c0_i32_1 = arith.constant 0 : i32
    return %c0_i32, %c0_i32_0 : i32, i32
  }
  func.func @transform_10(%arg0: i32) -> (i32, i32) {
    %c0_i32 = arith.constant 0 : i32
    %c0_i32_0 = arith.constant 0 : i32
    %c0_i32_1 = arith.constant 0 : i32
    return %c0_i32, %c0_i32_0 : i32, i32
  }
  func.func @transform_11(%arg0: i32) -> (i32, i32) {
    %c0_i32 = arith.constant 0 : i32
    %c0_i32_0 = arith.constant 0 : i32
    %c0_i32_1 = arith.constant 0 : i32
    return %c0_i32, %c0_i32_0 : i32, i32
  }
  func.func @transform_12(%arg0: i32) -> (i32, i32) {
    %c0_i32 = arith.constant 0 : i32
    %c0_i32_0 = arith.constant 0 : i32
    %c0_i32_1 = arith.constant 0 : i32
    return %c0_i32, %c0_i32_0 : i32, i32
  }
  func.func @transform_13(%arg0: i32) -> (i32, i32) {
    %c0_i32 = arith.constant 0 : i32
    %c0_i32_0 = arith.constant 0 : i32
    %c0_i32_1 = arith.constant 0 : i32
    return %c0_i32, %c0_i32_0 : i32, i32
  }
  func.func @transform_14(%arg0: i32) -> (i32, i32, i32) {
    %c0_i32 = arith.constant 0 : i32
    %c0_i32_0 = arith.constant 0 : i32
    %c0_i32_1 = arith.constant 0 : i32
    return %arg0, %c0_i32, %c0_i32_0 : i32, i32, i32
  }
}

</mosaic_0001>

<llo_original>
// kernel: tpu_custom_call.1
$region0: #{tpu_custom_call.1}
  #allocation0 [shape = 'u32[]', space=smem, size = 0x4, offset = 0x4, fixed_abs, tag = 'smem constant byte address 0x4 - core index']
  #allocation1 [shape = 'u32[144,128]{1,0:T(1,128)}', space=vmem, size = 0x12000, scoped, tag = 'internal scratch']
  %s0 = inlined_call_operand.vmem [shape: f32[2,64,32], index: 0, kind: input, shape index: {}]
  %s1 = inlined_call_operand.vmem [shape: f32[2,64,32], index: 1, kind: input, shape index: {}]
  %s2 = inlined_call_operand.vmem [shape: f32[1,32], index: 2, kind: input, shape index: {}]
  %s3 = inlined_call_operand.vmem [shape: f32[1,32], index: 3, kind: input, shape index: {}]
  %s4 = inlined_call_operand.vmem [shape: f32[32,64], index: 4, kind: input, shape index: {}]
  %s5 = inlined_call_operand.vmem [shape: f32[1,64], index: 5, kind: input, shape index: {}]
  %s6 = inlined_call_operand.vmem [shape: f32[1,64], index: 6, kind: input, shape index: {}]
  %s7 = inlined_call_operand.vmem [shape: f32[1,64], index: 7, kind: input, shape index: {}]
  %s8 = inlined_call_operand.vmem [shape: f32[1,64], index: 8, kind: input, shape index: {}]
  %s9 = inlined_call_operand.vmem [shape: f32[1,64], index: 9, kind: input, shape index: {}]
  %s10 = inlined_call_operand.vmem [shape: f32[64,128], index: 10, kind: input, shape index: {}]
  %s11 = inlined_call_operand.vmem [shape: f32[1,128], index: 11, kind: input, shape index: {}]
  %s12 = inlined_call_operand.vmem [shape: f32[128,64], index: 12, kind: input, shape index: {}]
  %s13 = inlined_call_operand.vmem [shape: f32[1,64], index: 13, kind: input, shape index: {}]
  %s14 = inlined_call_operand.hbm [shape: f32[2,64,64], index: 14, kind: output, shape index: {}]
  %s15 = sld [smem:[#allocation0]]
  $region89: #{tpu_custom_call.1} parent=0
    _
  %s17 = ssub.s32 1, %s15
  %s18 = scalar_select 0, %s17, %s15
  $region1: #{tpu_custom_call.1} parent=0
    #allocation2 [shape = 'u8[65536]{0}', space=vmem, size = 0x10000, scoped, tag = 'output window, operand 0']
    #allocation3 [shape = 's32[2]{0}', space=sflag, size = 0x8, scoped, tag = 'scoped memory for tpu_custom_call.1']
    %19 = vsyncpa [#allocation3], 0
    %s20 = scalar_lea.sflag [#allocation3], 1
    %21 = vsyncpa %s20, 0
    loop: start=0, step=1, limit=4
    $region2: #{tpu_custom_call.1} parent=1 // loop_pre_header
      _
    $region3: #{tpu_custom_call.1} parent=1 // loop_header
      %s23 = sphi 0, %s27
      %p24 = scmp.ge.s32.totalorder %s23, 4
      %s33 = sphi 0, %s35
      %s36 = sphi 0, %s33
      %s37 = sphi 0, %s36
      %s53 = sphi 0, %s37
      %s59 = sphi 0, %s61
      %s62 = sphi 0, %s59
      %s63 = sphi 0, %s62
      %s79 = sphi 0, %s63
      %s83 = sphi 0, %s83
      %s85 = sphi 0, %s83
      %s86 = sphi 0, %s85
      %s100 = sphi 0, %s86
      %s104 = sphi 0, %s104
      %s106 = sphi 0, %s104
      %s107 = sphi 0, %s106
      %s121 = sphi 0, %s107
      %s125 = sphi 0, %s125
      %s127 = sphi 0, %s125
      %s128 = sphi 0, %s127
      %s142 = sphi 0, %s128
      %s146 = sphi 0, %s146
      %s148 = sphi 0, %s146
      %s149 = sphi 0, %s148
      %s163 = sphi 0, %s149
      %s167 = sphi 0, %s167
      %s169 = sphi 0, %s167
      %s170 = sphi 0, %s169
      %s184 = sphi 0, %s170
      %s188 = sphi 0, %s188
      %s190 = sphi 0, %s188
      %s191 = sphi 0, %s190
      %s205 = sphi 0, %s191
      %s209 = sphi 0, %s209
      %s211 = sphi 0, %s209
      %s212 = sphi 0, %s211
      %s226 = sphi 0, %s212
      %s230 = sphi 0, %s230
      %s232 = sphi 0, %s230
      %s233 = sphi 0, %s232
      %s247 = sphi 0, %s233
      %s251 = sphi 0, %s251
      %s253 = sphi 0, %s251
      %s254 = sphi 0, %s253
      %s268 = sphi 0, %s254
      %s272 = sphi 0, %s272
      %s274 = sphi 0, %s272
      %s275 = sphi 0, %s274
      %s289 = sphi 0, %s275
      %s293 = sphi 0, %s293
      %s295 = sphi 0, %s293
      %s296 = sphi 0, %s295
      %s310 = sphi 0, %s296
      %s314 = sphi 0, %s314
      %s316 = sphi 0, %s314
      %s317 = sphi 0, %s316
      %s331 = sphi 0, %s317
      %s337 = sphi 0, %s339
      %s340 = sphi 0, %s337
      %s341 = sphi 0, %s340
      %s357 = sphi 0, %s341
    $region4: #{tpu_custom_call.1} parent=1 // loop_header_branch
      %26 = sbr.rel (%p24) target = $region8
    $region5: #{tpu_custom_call.1} parent=1 // loop_body
      %s28 = ssub.s32 %s23, 1
      %s29 = ssub.s32 %s23, 2
      %s30 = sadd.s32 %s23, 1
      %s31 = ssub.s32 %s23, %s30
      %p32 = scmp.eq.s32.totalorder %s31, 0
      %s34 = sadd.s32 %s33, 1
      %s35 = scalar_select %p32, %s33, %s34
      %p38 = pneg %p32
      %p39 = scmp.eq.s32.totalorder %s23, 1
      %p40 = por %p38, %p39
      %p41 = scmp.ne.s32.totalorder %s33, %s36
      %p42 = scmp.eq.s32.totalorder %s23, 0
      %p43 = por %p41, %p42
      %p44 = scmp.ne.s32.totalorder %s33, %s36
      %p45 = scmp.eq.s32.totalorder %s28, 1
      %p46 = por %p44, %p45
      %p47 = scmp.ne.s32.totalorder %s36, %s37
      %p48 = scmp.eq.s32.totalorder %s28, 0
      %p49 = por %p47, %p48
      %p50 = scmp.ne.s32.totalorder %s36, %s37
      %p51 = scmp.eq.s32.totalorder %s29, 1
      %p52 = por %p50, %p51
      %p54 = scmp.ne.s32.totalorder %s37, %s53
      %p55 = scmp.eq.s32.totalorder %s29, 0
      %p56 = por %p54, %p55
      %s57 = ssub.s32 %s23, %s30
      %p58 = scmp.eq.s32.totalorder %s57, 0
      %s60 = sadd.s32 %s59, 1
      %s61 = scalar_select %p58, %s59, %s60
      %p64 = pneg %p58
      %p65 = scmp.eq.s32.totalorder %s23, 1
      %p66 = por %p64, %p65
      %p67 = scmp.ne.s32.totalorder %s59, %s62
      %p68 = scmp.eq.s32.totalorder %s23, 0
      %p69 = por %p67, %p68
      %p70 = scmp.ne.s32.totalorder %s59, %s62
      %p71 = scmp.eq.s32.totalorder %s28, 1
      %p72 = por %p70, %p71
      %p73 = scmp.ne.s32.totalorder %s62, %s63
      %p74 = scmp.eq.s32.totalorder %s28, 0
      %p75 = por %p73, %p74
      %p76 = scmp.ne.s32.totalorder %s62, %s63
      %p77 = scmp.eq.s32.totalorder %s29, 1
      %p78 = por %p76, %p77
      %p80 = scmp.ne.s32.totalorder %s63, %s79
      %p81 = scmp.eq.s32.totalorder %s29, 0
      %p82 = por %p80, %p81
      %s84 = sadd.s32 %s83, 1
      %p87 = scmp.eq.s32.totalorder %s23, 1
      %p88 = scmp.ne.s32.totalorder %s83, %s85
      %p89 = scmp.eq.s32.totalorder %s23, 0
      %p90 = por %p88, %p89
      %p91 = scmp.ne.s32.totalorder %s83, %s85
      %p92 = scmp.eq.s32.totalorder %s28, 1
      %p93 = por %p91, %p92
      %p94 = scmp.ne.s32.totalorder %s85, %s86
      %p95 = scmp.eq.s32.totalorder %s28, 0
      %p96 = por %p94, %p95
      %p97 = scmp.ne.s32.totalorder %s85, %s86
      %p98 = scmp.eq.s32.totalorder %s29, 1
      %p99 = por %p97, %p98
      %p101 = scmp.ne.s32.totalorder %s86, %s100
      %p102 = scmp.eq.s32.totalorder %s29, 0
      %p103 = por %p101, %p102
      %s105 = sadd.s32 %s104, 1
      %p108 = scmp.eq.s32.totalorder %s23, 1
      %p109 = scmp.ne.s32.totalorder %s104, %s106
      %p110 = scmp.eq.s32.totalorder %s23, 0
      %p111 = por %p109, %p110
      %p112 = scmp.ne.s32.totalorder %s104, %s106
      %p113 = scmp.eq.s32.totalorder %s28, 1
      %p114 = por %p112, %p113
      %p115 = scmp.ne.s32.totalorder %s106, %s107
      %p116 = scmp.eq.s32.totalorder %s28, 0
      %p117 = por %p115, %p116
      %p118 = scmp.ne.s32.totalorder %s106, %s107
      %p119 = scmp.eq.s32.totalorder %s29, 1
      %p120 = por %p118, %p119
      %p122 = scmp.ne.s32.totalorder %s107, %s121
      %p123 = scmp.eq.s32.totalorder %s29, 0
      %p124 = por %p122, %p123
      %s126 = sadd.s32 %s125, 1
      %p129 = scmp.eq.s32.totalorder %s23, 1
      %p130 = scmp.ne.s32.totalorder %s125, %s127
      %p131 = scmp.eq.s32.totalorder %s23, 0
      %p132 = por %p130, %p131
      %p133 = scmp.ne.s32.totalorder %s125, %s127
      %p134 = scmp.eq.s32.totalorder %s28, 1
      %p135 = por %p133, %p134
      %p136 = scmp.ne.s32.totalorder %s127, %s128
      %p137 = scmp.eq.s32.totalorder %s28, 0
      %p138 = por %p136, %p137
      %p139 = scmp.ne.s32.totalorder %s127, %s128
      %p140 = scmp.eq.s32.totalorder %s29, 1
      %p141 = por %p139, %p140
      %p143 = scmp.ne.s32.totalorder %s128, %s142
      %p144 = scmp.eq.s32.totalorder %s29, 0
      %p145 = por %p143, %p144
      %s147 = sadd.s32 %s146, 1
      %p150 = scmp.eq.s32.totalorder %s23, 1
      %p151 = scmp.ne.s32.totalorder %s146, %s148
      %p152 = scmp.eq.s32.totalorder %s23, 0
      %p153 = por %p151, %p152
      %p154 = scmp.ne.s32.totalorder %s146, %s148
      %p155 = scmp.eq.s32.totalorder %s28, 1
      %p156 = por %p154, %p155
      %p157 = scmp.ne.s32.totalorder %s148, %s149
      %p158 = scmp.eq.s32.totalorder %s28, 0
      %p159 = por %p157, %p158
      %p160 = scmp.ne.s32.totalorder %s148, %s149
      %p161 = scmp.eq.s32.totalorder %s29, 1
      %p162 = por %p160, %p161
      %p164 = scmp.ne.s32.totalorder %s149, %s163
      %p165 = scmp.eq.s32.totalorder %s29, 0
      %p166 = por %p164, %p165
      %s168 = sadd.s32 %s167, 1
      %p171 = scmp.eq.s32.totalorder %s23, 1
      %p172 = scmp.ne.s32.totalorder %s167, %s169
      %p173 = scmp.eq.s32.totalorder %s23, 0
      %p174 = por %p172, %p173
      %p175 = scmp.ne.s32.totalorder %s167, %s169
      %p176 = scmp.eq.s32.totalorder %s28, 1
      %p177 = por %p175, %p176
      %p178 = scmp.ne.s32.totalorder %s169, %s170
      %p179 = scmp.eq.s32.totalorder %s28, 0
      %p180 = por %p178, %p179
      %p181 = scmp.ne.s32.totalorder %s169, %s170
      %p182 = scmp.eq.s32.totalorder %s29, 1
      %p183 = por %p181, %p182
      %p185 = scmp.ne.s32.totalorder %s170, %s184
      %p186 = scmp.eq.s32.totalorder %s29, 0
      %p187 = por %p185, %p186
      %s189 = sadd.s32 %s188, 1
      %p192 = scmp.eq.s32.totalorder %s23, 1
      %p193 = scmp.ne.s32.totalorder %s188, %s190
      %p194 = scmp.eq.s32.totalorder %s23, 0
      %p195 = por %p193, %p194
      %p196 = scmp.ne.s32.totalorder %s188, %s190
      %p197 = scmp.eq.s32.totalorder %s28, 1
      %p198 = por %p196, %p197
      %p199 = scmp.ne.s32.totalorder %s190, %s191
      %p200 = scmp.eq.s32.totalorder %s28, 0
      %p201 = por %p199, %p200
      %p202 = scmp.ne.s32.totalorder %s190, %s191
      %p203 = scmp.eq.s32.totalorder %s29, 1
      %p204 = por %p202, %p203
      %p206 = scmp.ne.s32.totalorder %s191, %s205
      %p207 = scmp.eq.s32.totalorder %s29, 0
      %p208 = por %p206, %p207
      %s210 = sadd.s32 %s209, 1
      %p213 = scmp.eq.s32.totalorder %s23, 1
      %p214 = scmp.ne.s32.totalorder %s209, %s211
      %p215 = scmp.eq.s32.totalorder %s23, 0
      %p216 = por %p214, %p215
      %p217 = scmp.ne.s32.totalorder %s209, %s211
      %p218 = scmp.eq.s32.totalorder %s28, 1
      %p219 = por %p217, %p218
      %p220 = scmp.ne.s32.totalorder %s211, %s212
      %p221 = scmp.eq.s32.totalorder %s28, 0
      %p222 = por %p220, %p221
      %p223 = scmp.ne.s32.totalorder %s211, %s212
      %p224 = scmp.eq.s32.totalorder %s29, 1
      %p225 = por %p223, %p224
      %p227 = scmp.ne.s32.totalorder %s212, %s226
      %p228 = scmp.eq.s32.totalorder %s29, 0
      %p229 = por %p227, %p228
      %s231 = sadd.s32 %s230, 1
      %p234 = scmp.eq.s32.totalorder %s23, 1
      %p235 = scmp.ne.s32.totalorder %s230, %s232
      %p236 = scmp.eq.s32.totalorder %s23, 0
      %p237 = por %p235, %p236
      %p238 = scmp.ne.s32.totalorder %s230, %s232
      %p239 = scmp.eq.s32.totalorder %s28, 1
      %p240 = por %p238, %p239
      %p241 = scmp.ne.s32.totalorder %s232, %s233
      %p242 = scmp.eq.s32.totalorder %s28, 0
      %p243 = por %p241, %p242
      %p244 = scmp.ne.s32.totalorder %s232, %s233
      %p245 = scmp.eq.s32.totalorder %s29, 1
      %p246 = por %p244, %p245
      %p248 = scmp.ne.s32.totalorder %s233, %s247
      %p249 = scmp.eq.s32.totalorder %s29, 0
      %p250 = por %p248, %p249
      %s252 = sadd.s32 %s251, 1
      %p255 = scmp.eq.s32.totalorder %s23, 1
      %p256 = scmp.ne.s32.totalorder %s251, %s253
      %p257 = scmp.eq.s32.totalorder %s23, 0
      %p258 = por %p256, %p257
      %p259 = scmp.ne.s32.totalorder %s251, %s253
      %p260 = scmp.eq.s32.totalorder %s28, 1
      %p261 = por %p259, %p260
      %p262 = scmp.ne.s32.totalorder %s253, %s254
      %p263 = scmp.eq.s32.totalorder %s28, 0
      %p264 = por %p262, %p263
      %p265 = scmp.ne.s32.totalorder %s253, %s254
      %p266 = scmp.eq.s32.totalorder %s29, 1
      %p267 = por %p265, %p266
      %p269 = scmp.ne.s32.totalorder %s254, %s268
      %p270 = scmp.eq.s32.totalorder %s29, 0
      %p271 = por %p269, %p270
      %s273 = sadd.s32 %s272, 1
      %p276 = scmp.eq.s32.totalorder %s23, 1
      %p277 = scmp.ne.s32.totalorder %s272, %s274
      %p278 = scmp.eq.s32.totalorder %s23, 0
      %p279 = por %p277, %p278
      %p280 = scmp.ne.s32.totalorder %s272, %s274
      %p281 = scmp.eq.s32.totalorder %s28, 1
      %p282 = por %p280, %p281
      %p283 = scmp.ne.s32.totalorder %s274, %s275
      %p284 = scmp.eq.s32.totalorder %s28, 0
      %p285 = por %p283, %p284
      %p286 = scmp.ne.s32.totalorder %s274, %s275
      %p287 = scmp.eq.s32.totalorder %s29, 1
      %p288 = por %p286, %p287
      %p290 = scmp.ne.s32.totalorder %s275, %s289
      %p291 = scmp.eq.s32.totalorder %s29, 0
      %p292 = por %p290, %p291
      %s294 = sadd.s32 %s293, 1
      %p297 = scmp.eq.s32.totalorder %s23, 1
      %p298 = scmp.ne.s32.totalorder %s293, %s295
      %p299 = scmp.eq.s32.totalorder %s23, 0
      %p300 = por %p298, %p299
      %p301 = scmp.ne.s32.totalorder %s293, %s295
      %p302 = scmp.eq.s32.totalorder %s28, 1
      %p303 = por %p301, %p302
      %p304 = scmp.ne.s32.totalorder %s295, %s296
      %p305 = scmp.eq.s32.totalorder %s28, 0
      %p306 = por %p304, %p305
      %p307 = scmp.ne.s32.totalorder %s295, %s296
      %p308 = scmp.eq.s32.totalorder %s29, 1
      %p309 = por %p307, %p308
      %p311 = scmp.ne.s32.totalorder %s296, %s310
      %p312 = scmp.eq.s32.totalorder %s29, 0
      %p313 = por %p311, %p312
      %s315 = sadd.s32 %s314, 1
      %p318 = scmp.eq.s32.totalorder %s23, 1
      %p319 = scmp.ne.s32.totalorder %s314, %s316
      %p320 = scmp.eq.s32.totalorder %s23, 0
      %p321 = por %p319, %p320
      %p322 = scmp.ne.s32.totalorder %s314, %s316
      %p323 = scmp.eq.s32.totalorder %s28, 1
      %p324 = por %p322, %p323
      %p325 = scmp.ne.s32.totalorder %s316, %s317
      %p326 = scmp.eq.s32.totalorder %s28, 0
      %p327 = por %p325, %p326
      %p328 = scmp.ne.s32.totalorder %s316, %s317
      %p329 = scmp.eq.s32.totalorder %s29, 1
      %p330 = por %p328, %p329
      %p332 = scmp.ne.s32.totalorder %s317, %s331
      %p333 = scmp.eq.s32.totalorder %s29, 0
      %p334 = por %p332, %p333
      %s335 = ssub.s32 %s23, %s30
      %p336 = scmp.eq.s32.totalorder %s335, 0
      %s338 = sadd.s32 %s337, 1
      %s339 = scalar_select %p336, %s337, %s338
      %p342 = pneg %p336
      %p343 = scmp.eq.s32.totalorder %s23, 1
      %p344 = por %p342, %p343
      %p345 = scmp.ne.s32.totalorder %s337, %s340
      %p346 = scmp.eq.s32.totalorder %s23, 0
      %p347 = por %p345, %p346
      %p348 = scmp.ne.s32.totalorder %s337, %s340
      %p349 = scmp.eq.s32.totalorder %s28, 1
      %p350 = por %p348, %p349
      %p351 = scmp.ne.s32.totalorder %s340, %s341
      %p352 = scmp.eq.s32.totalorder %s28, 0
      %p353 = por %p351, %p352
      %p354 = scmp.ne.s32.totalorder %s340, %s341
      %p355 = scmp.eq.s32.totalorder %s29, 1
      %p356 = por %p354, %p355
      %p358 = scmp.ne.s32.totalorder %s341, %s357
      %p359 = scmp.eq.s32.totalorder %s29, 0
      %p360 = por %p358, %p359
      %p361 = scmp.le.s32.totalorder 1, %s23
      %p362 = scmp.lt.s32.totalorder %s23, 3
      %p363 = pnand %p361, %p362
      %p364 = pneg %p363
      // Predicated region
      $region9: #{tpu_custom_call.1} parent=5 // pred_check
        _
      $region10: #{tpu_custom_call.1} parent=5 // pred_check_branch
        %366 = sbr.rel (%p363) target = $region12
      $region11: #{tpu_custom_call.1} parent=5 // pred_region
        %s367 = ssub.s32 %s23, 1
        // Predicated region
        $region13: #{tpu_custom_call.1} parent=11 // pred_check
          %p368 = pneg %p96
        $region14: #{tpu_custom_call.1} parent=11 // pred_check_branch
          %370 = sbr.rel (%p368) target = $region16
        $region15: #{tpu_custom_call.1} parent=11 // pred_region
          _
        $region16: #{tpu_custom_call.1} parent=11 // pred_fallthru
          _
        // Predicated region
        $region17: #{tpu_custom_call.1} parent=11 // pred_check
          %p371 = pneg %p117
        $region18: #{tpu_custom_call.1} parent=11 // pred_check_branch
          %373 = sbr.rel (%p371) target = $region20
        $region19: #{tpu_custom_call.1} parent=11 // pred_region
          _
        $region20: #{tpu_custom_call.1} parent=11 // pred_fallthru
          _
        // Predicated region
        $region21: #{tpu_custom_call.1} parent=11 // pred_check
          %p374 = pneg %p138
        $region22: #{tpu_custom_call.1} parent=11 // pred_check_branch
          %376 = sbr.rel (%p374) target = $region24
        $region23: #{tpu_custom_call.1} parent=11 // pred_region
          _
        $region24: #{tpu_custom_call.1} parent=11 // pred_fallthru
          _
        // Predicated region
        $region25: #{tpu_custom_call.1} parent=11 // pred_check
          %p377 = pneg %p159
        $region26: #{tpu_custom_call.1} parent=11 // pred_check_branch
          %379 = sbr.rel (%p377) target = $region28
        $region27: #{tpu_custom_call.1} parent=11 // pred_region
          _
        $region28: #{tpu_custom_call.1} parent=11 // pred_fallthru
          _
        // Predicated region
        $region29: #{tpu_custom_call.1} parent=11 // pred_check
          %p380 = pneg %p180
        $region30: #{tpu_custom_call.1} parent=11 // pred_check_branch
          %382 = sbr.rel (%p380) target = $region32
        $region31: #{tpu_custom_call.1} parent=11 // pred_region
          _
        $region32: #{tpu_custom_call.1} parent=11 // pred_fallthru
          _
        // Predicated region
        $region33: #{tpu_custom_call.1} parent=11 // pred_check
          %p383 = pneg %p201
        $region34: #{tpu_custom_call.1} parent=11 // pred_check_branch
          %385 = sbr.rel (%p383) target = $region36
        $region35: #{tpu_custom_call.1} parent=11 // pred_region
          _
        $region36: #{tpu_custom_call.1} parent=11 // pred_fallthru
          _
        // Predicated region
        $region37: #{tpu_custom_call.1} parent=11 // pred_check
          %p386 = pneg %p222
        $region38: #{tpu_custom_call.1} parent=11 // pred_check_branch
          %388 = sbr.rel (%p386) target = $region40
        $region39: #{tpu_custom_call.1} parent=11 // pred_region
          _
        $region40: #{tpu_custom_call.1} parent=11 // pred_fallthru
          _
        // Predicated region
        $region41: #{tpu_custom_call.1} parent=11 // pred_check
          %p389 = pneg %p243
        $region42: #{tpu_custom_call.1} parent=11 // pred_check_branch
          %391 = sbr.rel (%p389) target = $region44
        $region43: #{tpu_custom_call.1} parent=11 // pred_region
          _
        $region44: #{tpu_custom_call.1} parent=11 // pred_fallthru
          _
        // Predicated region
        $region45: #{tpu_custom_call.1} parent=11 // pred_check
          %p392 = pneg %p264
        $region46: #{tpu_custom_call.1} parent=11 // pred_check_branch
          %394 = sbr.rel (%p392) target = $region48
        $region47: #{tpu_custom_call.1} parent=11 // pred_region
          _
        $region48: #{tpu_custom_call.1} parent=11 // pred_fallthru
          _
        // Predicated region
        $region49: #{tpu_custom_call.1} parent=11 // pred_check
          %p395 = pneg %p285
        $region50: #{tpu_custom_call.1} parent=11 // pred_check_branch
          %397 = sbr.rel (%p395) target = $region52
        $region51: #{tpu_custom_call.1} parent=11 // pred_region
          _
        $region52: #{tpu_custom_call.1} parent=11 // pred_fallthru
          _
        // Predicated region
        $region53: #{tpu_custom_call.1} parent=11 // pred_check
          %p398 = pneg %p306
        $region54: #{tpu_custom_call.1} parent=11 // pred_check_branch
          %400 = sbr.rel (%p398) target = $region56
        $region55: #{tpu_custom_call.1} parent=11 // pred_region
          _
        $region56: #{tpu_custom_call.1} parent=11 // pred_fallthru
          _
        // Predicated region
        $region57: #{tpu_custom_call.1} parent=11 // pred_check
          %p401 = pneg %p327
        $region58: #{tpu_custom_call.1} parent=11 // pred_check_branch
          %403 = sbr.rel (%p401) target = $region60
        $region59: #{tpu_custom_call.1} parent=11 // pred_region
          _
        $region60: #{tpu_custom_call.1} parent=11 // pred_fallthru
          _
      $region12: #{tpu_custom_call.1} parent=5 // pred_fallthru
        _
      %p404 = scmp.lt.s32.totalorder %s23, 2
      // Predicated region
      $region61: #{tpu_custom_call.1} parent=5 // pred_check
        %p405 = pneg %p404
      $region62: #{tpu_custom_call.1} parent=5 // pred_check_branch
        %407 = sbr.rel (%p405) target = $region64
      $region63: #{tpu_custom_call.1} parent=5 // pred_region
        // Predicated region
        $region65: #{tpu_custom_call.1} parent=63 // pred_check
          %p408 = pneg %p43
        $region66: #{tpu_custom_call.1} parent=63 // pred_check_branch
          %410 = sbr.rel (%p408) target = $region68
        $region67: #{tpu_custom_call.1} parent=63 // pred_region
          %p411 = scmp.lt.s32.totalorder %s23, 1
          %s412 = scalar_select %p411, %s23, 1
          %s413 = smul.addr %s412, 8
          %s414 = smul.addr %s413, 8
          %s415 = scalar_lea.vmem %s0, %s414
        $region68: #{tpu_custom_call.1} parent=63 // pred_fallthru
          _
        // Predicated region
        $region69: #{tpu_custom_call.1} parent=63 // pred_check
          %p416 = pneg %p69
        $region70: #{tpu_custom_call.1} parent=63 // pred_check_branch
          %418 = sbr.rel (%p416) target = $region72
        $region71: #{tpu_custom_call.1} parent=63 // pred_region
          %p419 = scmp.lt.s32.totalorder %s23, 1
          %s420 = scalar_select %p419, %s23, 1
          %s421 = smul.addr %s420, 8
          %s422 = smul.addr %s421, 8
          %s423 = scalar_lea.vmem %s1, %s422
        $region72: #{tpu_custom_call.1} parent=63 // pred_fallthru
          _
      $region64: #{tpu_custom_call.1} parent=5 // pred_fallthru
        _
      %p424 = scmp.le.s32.totalorder 1, %s23
      %p425 = scmp.lt.s32.totalorder %s23, 3
      %p426 = pnand %p424, %p425
      %p427 = pneg %p426
      // Predicated region
      $region73: #{tpu_custom_call.1} parent=5 // pred_check
        _
      $region74: #{tpu_custom_call.1} parent=5 // pred_check_branch
        %429 = sbr.rel (%p426) target = $region76
      $region75: #{tpu_custom_call.1} parent=5 // pred_region
        %s430 = ssub.s32 %s23, 1
        %p431 = scmp.lt.s32.totalorder %s28, 1
        %s432 = scalar_select %p431, %s28, 1
        %s433 = smul.addr %s432, 8
        %s434 = smul.addr %s433, 8
        %s435 = scalar_lea.vmem %s0, %s434
        %p436 = pneg %p49
        %p437 = pneg %p46
        %p438 = scmp.lt.s32.totalorder %s28, 1
        %s439 = scalar_select %p438, %s28, 1
        %s440 = smul.addr %s439, 8
        %s441 = smul.addr %s440, 8
        %s442 = scalar_lea.vmem %s1, %s441
        %p443 = pneg %p75
        %p444 = pneg %p72
        %p445 = pneg %p96
        %p446 = pneg %p93
        %p447 = pneg %p117
        %p448 = pneg %p114
        %p449 = pneg %p138
        %p450 = pneg %p135
        %p451 = pneg %p159
        %p452 = pneg %p156
        %p453 = pneg %p180
        %p454 = pneg %p177
        %p455 = pneg %p201
        %p456 = pneg %p198
        %p457 = pneg %p222
        %p458 = pneg %p219
        %p459 = pneg %p243
        %p460 = pneg %p240
        %p461 = pneg %p264
        %p462 = pneg %p261
        %p463 = pneg %p285
        %p464 = pneg %p282
        %p465 = pneg %p306
        %p466 = pneg %p303
        %p467 = pneg %p327
        %p468 = pneg %p324
        %p469 = pneg %p353
        %p470 = pneg %p350
        %s471 = sand.u32 %s340, 1
        %s472 = scalar_lea.sflag [#allocation3], %s471
        %s473 = sand.u32 %s340, 1
        %s474 = smul.addr %s473, 64
        %s475 = scalar_lea.vmem [#allocation2], %s474
        %p476 = scmp.lt.s32.totalorder %s28, 1
        %s477 = scalar_select %p476, %s28, 1
        %s478 = smul.addr %s477, 8
        %s479 = smul.addr %s478, 8
        %s480 = scalar_lea.vmem %s0, %s479
        %p481 = scmp.lt.s32.totalorder %s28, 1
        %s482 = scalar_select %p481, %s28, 1
        %s483 = smul.addr %s482, 8
        %s484 = smul.addr %s483, 8
        %s485 = scalar_lea.vmem %s1, %s484
        %v486 = vld [vmem:[%s480] sm:$0xff]
        %v487 = vld [vmem:[%s480 + $0x8] sm:$0xff]
        %v488 = vld [vmem:[%s480 + $0x10] sm:$0xff]
        %v489 = vld [vmem:[%s480 + $0x18] sm:$0xff]
        %v490 = vld [vmem:[%s480 + $0x20] sm:$0xff]
        %v491 = vld [vmem:[%s480 + $0x28] sm:$0xff]
        %v492 = vld [vmem:[%s480 + $0x30] sm:$0xff]
        %v493 = vld [vmem:[%s480 + $0x38] sm:$0xff]
        %v494 = vld [vmem:[%s485] sm:$0xff]
        %v495 = vld [vmem:[%s485 + $0x8] sm:$0xff]
        %v496 = vld [vmem:[%s485 + $0x10] sm:$0xff]
        %v497 = vld [vmem:[%s485 + $0x18] sm:$0xff]
        %v498 = vld [vmem:[%s485 + $0x20] sm:$0xff]
        %v499 = vld [vmem:[%s485 + $0x28] sm:$0xff]
        %v500 = vld [vmem:[%s485 + $0x30] sm:$0xff]
        %v501 = vld [vmem:[%s485 + $0x38] sm:$0xff]
        %v502 = vld [vmem:[%s2] sm:$0x1]
        %v503 = vld [vmem:[%s3] sm:$0x1]
        %vm504 = vcmask 261120
        %v505 = vsel %vm504, %v486, 0.0
        %506 = vadd.xlane.f32.xlu0 %v505
        %v507 = vpop.xlane.xlu0 %506
        %v508 = vsel %vm504, %v487, 0.0
        %509 = vadd.xlane.f32.xlu0 %v508
        %v510 = vpop.xlane.xlu0 %509
        %v511 = vsel %vm504, %v488, 0.0
        %512 = vadd.xlane.f32.xlu0 %v511
        %v513 = vpop.xlane.xlu0 %512
        %v514 = vsel %vm504, %v489, 0.0
        %515 = vadd.xlane.f32.xlu0 %v514
        %v516 = vpop.xlane.xlu0 %515
        %v517 = vsel %vm504, %v490, 0.0
        %518 = vadd.xlane.f32.xlu0 %v517
        %v519 = vpop.xlane.xlu0 %518
        %v520 = vsel %vm504, %v491, 0.0
        %521 = vadd.xlane.f32.xlu0 %v520
        %v522 = vpop.xlane.xlu0 %521
        %v523 = vsel %vm504, %v492, 0.0
        %524 = vadd.xlane.f32.xlu0 %v523
        %v525 = vpop.xlane.xlu0 %524
        %v526 = vsel %vm504, %v493, 0.0
        %527 = vadd.xlane.f32.xlu0 %v526
        %v528 = vpop.xlane.xlu0 %527
        %v529 = vrcp.pop 32.0
        %v530 = vmul.f32 %v507, %v529
        %v531 = vmul.f32 %v510, %v529
        %v532 = vmul.f32 %v513, %v529
        %v533 = vmul.f32 %v516, %v529
        %v534 = vmul.f32 %v519, %v529
        %v535 = vmul.f32 %v522, %v529
        %v536 = vmul.f32 %v525, %v529
        %v537 = vmul.f32 %v528, %v529
        %v538 = vsub.f32 %v486, %v530
        %v539 = vsub.f32 %v487, %v531
        %v540 = vsub.f32 %v488, %v532
        %v541 = vsub.f32 %v489, %v533
        %v542 = vsub.f32 %v490, %v534
        %v543 = vsub.f32 %v491, %v535
        %v544 = vsub.f32 %v492, %v536
        %v545 = vsub.f32 %v493, %v537
        %v546 = vmul.f32 %v538, %v538
        %v547 = vmul.f32 %v539, %v539
        %v548 = vmul.f32 %v540, %v540
        %v549 = vmul.f32 %v541, %v541
        %v550 = vmul.f32 %v542, %v542
        %v551 = vmul.f32 %v543, %v543
        %v552 = vmul.f32 %v544, %v544
        %v553 = vmul.f32 %v545, %v545
        %v554 = vsel %vm504, %v546, 0.0
        %555 = vadd.xlane.f32.xlu0 %v554
        %v556 = vpop.xlane.xlu0 %555
        %v557 = vsel %vm504, %v547, 0.0
        %558 = vadd.xlane.f32.xlu0 %v557
        %v559 = vpop.xlane.xlu0 %558
        %v560 = vsel %vm504, %v548, 0.0
        %561 = vadd.xlane.f32.xlu0 %v560
        %v562 = vpop.xlane.xlu0 %561
        %v563 = vsel %vm504, %v549, 0.0
        %564 = vadd.xlane.f32.xlu0 %v563
        %v565 = vpop.xlane.xlu0 %564
        %v566 = vsel %vm504, %v550, 0.0
        %567 = vadd.xlane.f32.xlu0 %v566
        %v568 = vpop.xlane.xlu0 %567
        %v569 = vsel %vm504, %v551, 0.0
        %570 = vadd.xlane.f32.xlu0 %v569
        %v571 = vpop.xlane.xlu0 %570
        %v572 = vsel %vm504, %v552, 0.0
        %573 = vadd.xlane.f32.xlu0 %v572
        %v574 = vpop.xlane.xlu0 %573
        %v575 = vsel %vm504, %v553, 0.0
        %576 = vadd.xlane.f32.xlu0 %v575
        %v577 = vpop.xlane.xlu0 %576
        %v578 = vmul.f32 %v556, %v529
        %v579 = vmul.f32 %v559, %v529
        %v580 = vmul.f32 %v562, %v529
        %v581 = vmul.f32 %v565, %v529
        %v582 = vmul.f32 %v568, %v529
        %v583 = vmul.f32 %v571, %v529
        %v584 = vmul.f32 %v574, %v529
        %v585 = vmul.f32 %v577, %v529
        %v586 = vadd.f32 %v578, 1e-05
        %v587 = vadd.f32 %v579, 1e-05
        %v588 = vadd.f32 %v580, 1e-05
        %v589 = vadd.f32 %v581, 1e-05
        %v590 = vadd.f32 %v582, 1e-05
        %v591 = vadd.f32 %v583, 1e-05
        %v592 = vadd.f32 %v584, 1e-05
        %v593 = vadd.f32 %v585, 1e-05
        %v594 = vrsqrt.pop %v586
        %v595 = vrsqrt.pop %v587
        %v596 = vrsqrt.pop %v588
        %v597 = vrsqrt.pop %v589
        %v598 = vrsqrt.pop %v590
        %v599 = vrsqrt.pop %v591
        %v600 = vrsqrt.pop %v592
        %v601 = vrsqrt.pop %v593
        %v602 = vmul.f32 %v538, %v594
        %v603 = vmul.f32 %v539, %v595
        %v604 = vmul.f32 %v540, %v596
        %v605 = vmul.f32 %v541, %v597
        %v606 = vmul.f32 %v542, %v598
        %v607 = vmul.f32 %v543, %v599
        %v608 = vmul.f32 %v544, %v600
        %v609 = vmul.f32 %v545, %v601
        %v611 = vlaneseq
        %v612 = vshrl.u32 %v611, 7
        %v613 = vsub.s32 0, %v612
        %v614 = vrot.slane %v502, %v613
        %v616 = vmul.f32 %v602, %v614
        %v617 = vmul.f32 %v603, %v614
        %v618 = vmul.f32 %v604, %v614
        %v619 = vmul.f32 %v605, %v614
        %v620 = vmul.f32 %v606, %v614
        %v621 = vmul.f32 %v607, %v614
        %v622 = vmul.f32 %v608, %v614
        %v623 = vmul.f32 %v609, %v614
        %v625 = vlaneseq
        %v626 = vshrl.u32 %v625, 7
        %v627 = vsub.s32 0, %v626
        %v628 = vrot.slane %v503, %v627
        %v630 = vadd.f32 %v616, %v628
        %v631 = vadd.f32 %v617, %v628
        %v632 = vadd.f32 %v618, %v628
        %v633 = vadd.f32 %v619, %v628
        %v634 = vadd.f32 %v620, %v628
        %v635 = vadd.f32 %v621, %v628
        %v636 = vadd.f32 %v622, %v628
        %v637 = vadd.f32 %v623, %v628
        %v638 = vsel %vm504, %v494, 0.0
        %639 = vadd.xlane.f32.xlu0 %v638
        %v640 = vpop.xlane.xlu0 %639
        %v641 = vsel %vm504, %v495, 0.0
        %642 = vadd.xlane.f32.xlu0 %v641
        %v643 = vpop.xlane.xlu0 %642
        %v644 = vsel %vm504, %v496, 0.0
        %645 = vadd.xlane.f32.xlu0 %v644
        %v646 = vpop.xlane.xlu0 %645
        %v647 = vsel %vm504, %v497, 0.0
        %648 = vadd.xlane.f32.xlu0 %v647
        %v649 = vpop.xlane.xlu0 %648
        %v650 = vsel %vm504, %v498, 0.0
        %651 = vadd.xlane.f32.xlu0 %v650
        %v652 = vpop.xlane.xlu0 %651
        %v653 = vsel %vm504, %v499, 0.0
        %654 = vadd.xlane.f32.xlu0 %v653
        %v655 = vpop.xlane.xlu0 %654
        %v656 = vsel %vm504, %v500, 0.0
        %657 = vadd.xlane.f32.xlu0 %v656
        %v658 = vpop.xlane.xlu0 %657
        %v659 = vsel %vm504, %v501, 0.0
        %660 = vadd.xlane.f32.xlu0 %v659
        %v661 = vpop.xlane.xlu0 %660
        %v662 = vmul.f32 %v640, %v529
        %v663 = vmul.f32 %v643, %v529
        %v664 = vmul.f32 %v646, %v529
        %v665 = vmul.f32 %v649, %v529
        %v666 = vmul.f32 %v652, %v529
        %v667 = vmul.f32 %v655, %v529
        %v668 = vmul.f32 %v658, %v529
        %v669 = vmul.f32 %v661, %v529
        %v670 = vsub.f32 %v494, %v662
        %v671 = vsub.f32 %v495, %v663
        %v672 = vsub.f32 %v496, %v664
        %v673 = vsub.f32 %v497, %v665
        %v674 = vsub.f32 %v498, %v666
        %v675 = vsub.f32 %v499, %v667
        %v676 = vsub.f32 %v500, %v668
        %v677 = vsub.f32 %v501, %v669
        %v678 = vmul.f32 %v670, %v670
        %v679 = vmul.f32 %v671, %v671
        %v680 = vmul.f32 %v672, %v672
        %v681 = vmul.f32 %v673, %v673
        %v682 = vmul.f32 %v674, %v674
        %v683 = vmul.f32 %v675, %v675
        %v684 = vmul.f32 %v676, %v676
        %v685 = vmul.f32 %v677, %v677
        %v686 = vsel %vm504, %v678, 0.0
        %687 = vadd.xlane.f32.xlu0 %v686
        %v688 = vpop.xlane.xlu0 %687
        %v689 = vsel %vm504, %v679, 0.0
        %690 = vadd.xlane.f32.xlu0 %v689
        %v691 = vpop.xlane.xlu0 %690
        %v692 = vsel %vm504, %v680, 0.0
        %693 = vadd.xlane.f32.xlu0 %v692
        %v694 = vpop.xlane.xlu0 %693
        %v695 = vsel %vm504, %v681, 0.0
        %696 = vadd.xlane.f32.xlu0 %v695
        %v697 = vpop.xlane.xlu0 %696
        %v698 = vsel %vm504, %v682, 0.0
        %699 = vadd.xlane.f32.xlu0 %v698
        %v700 = vpop.xlane.xlu0 %699
        %v701 = vsel %vm504, %v683, 0.0
        %702 = vadd.xlane.f32.xlu0 %v701
        %v703 = vpop.xlane.xlu0 %702
        %v704 = vsel %vm504, %v684, 0.0
        %705 = vadd.xlane.f32.xlu0 %v704
        %v706 = vpop.xlane.xlu0 %705
        %v707 = vsel %vm504, %v685, 0.0
        %708 = vadd.xlane.f32.xlu0 %v707
        %v709 = vpop.xlane.xlu0 %708
        %v710 = vmul.f32 %v688, %v529
        %v711 = vmul.f32 %v691, %v529
        %v712 = vmul.f32 %v694, %v529
        %v713 = vmul.f32 %v697, %v529
        %v714 = vmul.f32 %v700, %v529
        %v715 = vmul.f32 %v703, %v529
        %v716 = vmul.f32 %v706, %v529
        %v717 = vmul.f32 %v709, %v529
        %v718 = vadd.f32 %v710, 1e-05
        %v719 = vadd.f32 %v711, 1e-05
        %v720 = vadd.f32 %v712, 1e-05
        %v721 = vadd.f32 %v713, 1e-05
        %v722 = vadd.f32 %v714, 1e-05
        %v723 = vadd.f32 %v715, 1e-05
        %v724 = vadd.f32 %v716, 1e-05
        %v725 = vadd.f32 %v717, 1e-05
        %v726 = vrsqrt.pop %v718
        %v727 = vrsqrt.pop %v719
        %v728 = vrsqrt.pop %v720
        %v729 = vrsqrt.pop %v721
        %v730 = vrsqrt.pop %v722
        %v731 = vrsqrt.pop %v723
        %v732 = vrsqrt.pop %v724
        %v733 = vrsqrt.pop %v725
        %v734 = vmul.f32 %v670, %v726
        %v735 = vmul.f32 %v671, %v727
        %v736 = vmul.f32 %v672, %v728
        %v737 = vmul.f32 %v673, %v729
        %v738 = vmul.f32 %v674, %v730
        %v739 = vmul.f32 %v675, %v731
        %v740 = vmul.f32 %v676, %v732
        %v741 = vmul.f32 %v677, %v733
        %v742 = vmul.f32 %v734, %v614
        %v743 = vmul.f32 %v735, %v614
        %v744 = vmul.f32 %v736, %v614
        %v745 = vmul.f32 %v737, %v614
        %v746 = vmul.f32 %v738, %v614
        %v747 = vmul.f32 %v739, %v614
        %v748 = vmul.f32 %v740, %v614
        %v749 = vmul.f32 %v741, %v614
        %v750 = vadd.f32 %v742, %v628
        %v751 = vadd.f32 %v743, %v628
        %v752 = vadd.f32 %v744, %v628
        %v753 = vadd.f32 %v745, %v628
        %v754 = vadd.f32 %v746, %v628
        %v755 = vadd.f32 %v747, %v628
        %v756 = vadd.f32 %v748, %v628
        %v757 = vadd.f32 %v749, %v628
        %v758 = vsel %vm504, %v750, -inf
        %v759 = vsel %vm504, %v751, -inf
        %v760 = vsel %vm504, %v752, -inf
        %v761 = vsel %vm504, %v753, -inf
        %v762 = vsel %vm504, %v754, -inf
        %v763 = vmax.f32 %v758, %v762
        %v764 = vsel %vm504, %v755, -inf
        %v765 = vmax.f32 %v759, %v764
        %v766 = vsel %vm504, %v756, -inf
        %v767 = vmax.f32 %v760, %v766
        %v768 = vsel %vm504, %v757, -inf
        %v769 = vmax.f32 %v761, %v768
        %v770 = vmax.f32 %v763, %v765
        %v771 = vmax.f32 %v767, %v769
        %v772 = vmax.f32 %v770, %v771
        %v773 = vrot.slane %v772, 4
        %v774 = vmax.f32 %v772, %v773
        %v775 = vrot.slane %v774, 2
        %v776 = vmax.f32 %v774, %v775
        %v777 = vrot.slane %v776, 1
        %v778 = vmax.f32 %v776, %v777
        %v779 = vsub.f32 %v750, %v778
        %v780 = vsub.f32 %v751, %v778
        %v781 = vsub.f32 %v752, %v778
        %v782 = vsub.f32 %v753, %v778
        %v783 = vsub.f32 %v754, %v778
        %v784 = vsub.f32 %v755, %v778
        %v785 = vsub.f32 %v756, %v778
        %v786 = vsub.f32 %v757, %v778
        %v787 = vmul.f32 %v779, 1.442695
        %v788 = vpow.pop %v787
        %v789 = vmul.f32 %v780, 1.442695
        %v790 = vpow.pop %v789
        %v791 = vmul.f32 %v781, 1.442695
        %v792 = vpow.pop %v791
        %v793 = vmul.f32 %v782, 1.442695
        %v794 = vpow.pop %v793
        %v795 = vmul.f32 %v783, 1.442695
        %v796 = vpow.pop %v795
        %v797 = vmul.f32 %v784, 1.442695
        %v798 = vpow.pop %v797
        %v799 = vmul.f32 %v785, 1.442695
        %v800 = vpow.pop %v799
        %v801 = vmul.f32 %v786, 1.442695
        %v802 = vpow.pop %v801
        %v803 = vsel %vm504, %v788, 0.0
        %v804 = vsel %vm504, %v790, 0.0
        %v805 = vadd.f32 %v803, %v804
        %v806 = vsel %vm504, %v792, 0.0
        %v807 = vadd.f32 %v805, %v806
        %v808 = vsel %vm504, %v794, 0.0
        %v809 = vadd.f32 %v807, %v808
        %v810 = vsel %vm504, %v796, 0.0
        %v811 = vadd.f32 %v809, %v810
        %v812 = vsel %vm504, %v798, 0.0
        %v813 = vadd.f32 %v811, %v812
        %v814 = vsel %vm504, %v800, 0.0
        %v815 = vadd.f32 %v813, %v814
        %v816 = vsel %vm504, %v802, 0.0
        %v817 = vadd.f32 %v815, %v816
        %v818 = vrot.slane %v817, 4
        %v819 = vadd.f32 %v817, %v818
        %v820 = vrot.slane %v819, 2
        %v821 = vadd.f32 %v819, %v820
        %v822 = vrot.slane %v821, 1
        %v823 = vadd.f32 %v821, %v822
        %v824 = vrcp.pop %v823
        %v825 = vmul.f32 %v788, %v824
        %v826 = vmul.f32 %v790, %v824
        %v827 = vmul.f32 %v792, %v824
        %v828 = vmul.f32 %v794, %v824
        %v829 = vmul.f32 %v796, %v824
        %v830 = vmul.f32 %v798, %v824
        %v831 = vmul.f32 %v800, %v824
        %v832 = vmul.f32 %v802, %v824
        %833 = vmax.xlane.f32.xlu0 %v758
        %v834 = vpop.xlane.xlu0 %833
        %835 = vmax.xlane.f32.xlu0 %v759
        %v836 = vpop.xlane.xlu0 %835
        %837 = vmax.xlane.f32.xlu0 %v760
        %v838 = vpop.xlane.xlu0 %837
        %839 = vmax.xlane.f32.xlu0 %v761
        %v840 = vpop.xlane.xlu0 %839
        %841 = vmax.xlane.f32.xlu0 %v762
        %v842 = vpop.xlane.xlu0 %841
        %843 = vmax.xlane.f32.xlu0 %v764
        %v844 = vpop.xlane.xlu0 %843
        %845 = vmax.xlane.f32.xlu0 %v766
        %v846 = vpop.xlane.xlu0 %845
        %847 = vmax.xlane.f32.xlu0 %v768
        %v848 = vpop.xlane.xlu0 %847
        %v849 = vsub.f32 %v750, %v834
        %v850 = vsub.f32 %v751, %v836
        %v851 = vsub.f32 %v752, %v838
        %v852 = vsub.f32 %v753, %v840
        %v853 = vsub.f32 %v754, %v842
        %v854 = vsub.f32 %v755, %v844
        %v855 = vsub.f32 %v756, %v846
        %v856 = vsub.f32 %v757, %v848
        %v857 = vmul.f32 %v849, 1.442695
        %v858 = vpow.pop %v857
        %v859 = vmul.f32 %v850, 1.442695
        %v860 = vpow.pop %v859
        %v861 = vmul.f32 %v851, 1.442695
        %v862 = vpow.pop %v861
        %v863 = vmul.f32 %v852, 1.442695
        %v864 = vpow.pop %v863
        %v865 = vmul.f32 %v853, 1.442695
        %v866 = vpow.pop %v865
        %v867 = vmul.f32 %v854, 1.442695
        %v868 = vpow.pop %v867
        %v869 = vmul.f32 %v855, 1.442695
        %v870 = vpow.pop %v869
        %v871 = vmul.f32 %v856, 1.442695
        %v872 = vpow.pop %v871
        %v873 = vsel %vm504, %v858, 0.0
        %874 = vadd.xlane.f32.xlu0 %v873
        %v875 = vpop.xlane.xlu0 %874
        %v876 = vsel %vm504, %v860, 0.0
        %877 = vadd.xlane.f32.xlu0 %v876
        %v878 = vpop.xlane.xlu0 %877
        %v879 = vsel %vm504, %v862, 0.0
        %880 = vadd.xlane.f32.xlu0 %v879
        %v881 = vpop.xlane.xlu0 %880
        %v882 = vsel %vm504, %v864, 0.0
        %883 = vadd.xlane.f32.xlu0 %v882
        %v884 = vpop.xlane.xlu0 %883
        %v885 = vsel %vm504, %v866, 0.0
        %886 = vadd.xlane.f32.xlu0 %v885
        %v887 = vpop.xlane.xlu0 %886
        %v888 = vsel %vm504, %v868, 0.0
        %889 = vadd.xlane.f32.xlu0 %v888
        %v890 = vpop.xlane.xlu0 %889
        %v891 = vsel %vm504, %v870, 0.0
        %892 = vadd.xlane.f32.xlu0 %v891
        %v893 = vpop.xlane.xlu0 %892
        %v894 = vsel %vm504, %v872, 0.0
        %895 = vadd.xlane.f32.xlu0 %v894
        %v896 = vpop.xlane.xlu0 %895
        %v897 = vrcp.pop %v875
        %v898 = vmul.f32 %v858, %v897
        %v899 = vrcp.pop %v878
        %v900 = vmul.f32 %v860, %v899
        %v901 = vrcp.pop %v881
        %v902 = vmul.f32 %v862, %v901
        %v903 = vrcp.pop %v884
        %v904 = vmul.f32 %v864, %v903
        %v905 = vrcp.pop %v887
        %v906 = vmul.f32 %v866, %v905
        %v907 = vrcp.pop %v890
        %v908 = vmul.f32 %v868, %v907
        %v909 = vrcp.pop %v893
        %v910 = vmul.f32 %v870, %v909
        %v911 = vrcp.pop %v896
        %v912 = vmul.f32 %v872, %v911
        %913 = vxpose.xlu0.b32.start [1/16] %v825, 128
        %914 = vxpose.xlu0.b32.cont [2/16] %v826, 128
        %915 = vxpose.xlu0.b32.cont [3/16] %v827, 128
        %916 = vxpose.xlu0.b32.cont [4/16] %v828, 128
        %917 = vxpose.xlu0.b32.cont [5/16] %v829, 128
        %918 = vxpose.xlu0.b32.cont [6/16] %v830, 128
        %919 = vxpose.xlu0.b32.cont [7/16] %v831, 128
        %920 = vxpose.xlu0.b32.cont [8/16] %v832, 128
        %921 = vxpose.xlu0.b32.cont [9/16] 0.0, 128
        %922 = vxpose.xlu0.b32.cont [10/16] 0.0, 128
        %923 = vxpose.xlu0.b32.cont [11/16] 0.0, 128
        %924 = vxpose.xlu0.b32.cont [12/16] 0.0, 128
        %925 = vxpose.xlu0.b32.cont [13/16] 0.0, 128
        %926 = vxpose.xlu0.b32.cont [14/16] 0.0, 128
        %927 = vxpose.xlu0.b32.cont [15/16] 0.0, 128
        %928 = vxpose.xlu0.b32.end [16/16] 0.0, 128
        %v929 = vpop.trf.xlu0
        %v930 = vpop.trf.xlu0
        %v931 = vpop.trf.xlu0
        %v932 = vpop.trf.xlu0
        %v933 = vpop.trf.xlu0
        %v934 = vpop.trf.xlu0
        %v935 = vpop.trf.xlu0
        %v936 = vpop.trf.xlu0
        %v937 = vpop.trf.xlu0
        %v938 = vpop.trf.xlu0
        %v939 = vpop.trf.xlu0
        %v940 = vpop.trf.xlu0
        %v941 = vpop.trf.xlu0
        %v942 = vpop.trf.xlu0
        %v943 = vpop.trf.xlu0
        %v944 = vpop.trf.xlu0
        %vm945 = vcmask 523264
        %v947 = vsel %vm945, %v929, 0
        %v950 = vsel %vm945, %v930, 0
        %v953 = vsel %vm945, %v931, 0
        %v956 = vsel %vm945, %v932, 0
        %958 = vmatprep.subr.mxu0 0.0
        %959 = vmatpush1.msra.mxu0 %v630
        %960 = vmatprep.subr.mxu0 0.0
        %961 = vmatpush1.msra.mxu0 %v631
        %962 = vmatprep.subr.mxu0 0.0
        %963 = vmatpush1.msra.mxu0 %v632
        %964 = vmatprep.subr.mxu0 0.0
        %965 = vmatpush1.msra.mxu0 %v633
        %966 = vmatprep.subr.mxu0 0.0
        %967 = vmatpush1.msra.mxu0 %v634
        %968 = vmatprep.subr.mxu0 0.0
        %969 = vmatpush1.msra.mxu0 %v635
        %970 = vmatprep.subr.mxu0 0.0
        %971 = vmatpush1.msra.mxu0 %v636
        %972 = vmatprep.subr.mxu0 0.0
        %973 = vmatpush1.msra.mxu0 %v637
        %974 = vmatprep.subr.mxu0 0.0
        %975 = vmatpush1.msra.mxu0 0.0
        %976 = vmatprep.subr.mxu0 0.0
        %977 = vmatpush1.msra.mxu0 0.0
        %978 = vmatprep.subr.mxu0 0.0
        %979 = vmatpush1.msra.mxu0 0.0
        %980 = vmatprep.subr.mxu0 0.0
        %981 = vmatpush1.msra.mxu0 0.0
        %982 = vmatprep.subr.mxu0 0.0
        %983 = vmatpush1.msra.mxu0 0.0
        %984 = vmatprep.subr.mxu0 0.0
        %985 = vmatpush1.msra.mxu0 0.0
        %986 = vmatprep.subr.mxu0 0.0
        %987 = vmatpush1.msra.mxu0 0.0
        %988 = vmatprep.subr.mxu0 0.0
        %989 = vmatpush1.msra.mxu0 0.0
        %990 = vmatprep.subr.mxu0 0.0
        %991 = vmatpush1.msra.mxu0 0.0
        %992 = vmatprep.subr.mxu0 0.0
        %993 = vmatpush1.msra.mxu0 0.0
        %994 = vmatprep.subr.mxu0 0.0
        %995 = vmatpush1.msra.mxu0 0.0
        %996 = vmatprep.subr.mxu0 0.0
        %997 = vmatpush1.msra.mxu0 0.0
        %998 = vmatprep.subr.mxu0 0.0
        %999 = vmatpush1.msra.mxu0 0.0
        %1000 = vmatprep.subr.mxu0 0.0
        %1001 = vmatpush1.msra.mxu0 0.0
        %1002 = vmatprep.subr.mxu0 0.0
        %1003 = vmatpush1.msra.mxu0 0.0
        %1004 = vmatprep.subr.mxu0 0.0
        %1005 = vmatpush1.msra.mxu0 0.0
        %1006 = vmatprep.subr.mxu0 0.0
        %1007 = vmatpush1.msra.mxu0 0.0
        %1008 = vmatprep.subr.mxu0 0.0
        %1009 = vmatpush1.msra.mxu0 0.0
        %1010 = vmatprep.subr.mxu0 0.0
        %1011 = vmatpush1.msra.mxu0 0.0
        %1012 = vmatprep.subr.mxu0 0.0
        %1013 = vmatpush1.msra.mxu0 0.0
        %1014 = vmatprep.subr.mxu0 0.0
        %1015 = vmatpush1.msra.mxu0 0.0
        %1016 = vmatprep.subr.mxu0 0.0
        %1017 = vmatpush1.msra.mxu0 0.0
        %1018 = vmatprep.subr.mxu0 0.0
        %1019 = vmatpush1.msra.mxu0 0.0
        %1020 = vmatprep.subr.mxu0 0.0
        %1021 = vmatpush1.msra.mxu0 0.0
        %1022 = vmatprep.mubr.f32.mxu0 0.0
        %1023 = vmatmul.mubr.f32.gmra.mrb[0].mxu0 %v947
        %v1024 = vpop.f32.mrb[0].mxu0
        %v1025 = vadd.f32 0.0, %v1024
        %v1026 = vpop.f32.mrb[0].mxu0
        %1027 = vmatprep.mubr.f32.mxu0 0.0
        %1028 = vmatmul.mubr.f32.gmra.mrb[0].mxu0 %v950
        %v1029 = vpop.f32.mrb[0].mxu0
        %v1030 = vadd.f32 0.0, %v1029
        %v1031 = vpop.f32.mrb[0].mxu0
        %1032 = vmatprep.mubr.f32.mxu0 0.0
        %1033 = vmatmul.mubr.f32.gmra.mrb[0].mxu0 %v953
        %v1034 = vpop.f32.mrb[0].mxu0
        %v1035 = vadd.f32 0.0, %v1034
        %v1036 = vpop.f32.mrb[0].mxu0
        %1037 = vmatprep.mubr.f32.mxu0 0.0
        %1038 = vmatmul.mubr.f32.gmra.mrb[0].mxu0 %v956
        %v1039 = vpop.f32.mrb[0].mxu0
        %v1040 = vadd.f32 0.0, %v1039
        %v1041 = vpop.f32.mrb[0].mxu0
        %1042 = vdwg.mxu0
        %v1044 = vsel %vm504, %v898, 0
        %v1047 = vsel %vm504, %v900, 0
        %v1050 = vsel %vm504, %v902, 0
        %v1053 = vsel %vm504, %v904, 0
        %v1056 = vsel %vm504, %v906, 0
        %v1059 = vsel %vm504, %v908, 0
        %v1062 = vsel %vm504, %v910, 0
        %v1065 = vsel %vm504, %v912, 0
        %1067 = vmatprep.subr.mxu0 0.0
        %1068 = vmatpush1.msra.mxu0 %v1025
        %1069 = vmatprep.subr.mxu0 0.0
        %1070 = vmatpush1.msra.mxu0 %v1030
        %1071 = vmatprep.subr.mxu0 0.0
        %1072 = vmatpush1.msra.mxu0 %v1035
        %1073 = vmatprep.subr.mxu0 0.0
        %1074 = vmatpush1.msra.mxu0 %v1040
        %1075 = vmatprep.subr.mxu0 0.0
        %1076 = vmatpush1.msra.mxu0 0.0
        %1077 = vmatprep.subr.mxu0 0.0
        %1078 = vmatpush1.msra.mxu0 0.0
        %1079 = vmatprep.subr.mxu0 0.0
        %1080 = vmatpush1.msra.mxu0 0.0
        %1081 = vmatprep.subr.mxu0 0.0
        %1082 = vmatpush1.msra.mxu0 0.0
        %1083 = vmatprep.subr.mxu0 0.0
        %1084 = vmatpush1.msra.mxu0 0.0
        %1085 = vmatprep.subr.mxu0 0.0
        %1086 = vmatpush1.msra.mxu0 0.0
        %1087 = vmatprep.subr.mxu0 0.0
        %1088 = vmatpush1.msra.mxu0 0.0
        %1089 = vmatprep.subr.mxu0 0.0
        %1090 = vmatpush1.msra.mxu0 0.0
        %1091 = vmatprep.subr.mxu0 0.0
        %1092 = vmatpush1.msra.mxu0 0.0
        %1093 = vmatprep.subr.mxu0 0.0
        %1094 = vmatpush1.msra.mxu0 0.0
        %1095 = vmatprep.subr.mxu0 0.0
        %1096 = vmatpush1.msra.mxu0 0.0
        %1097 = vmatprep.subr.mxu0 0.0
        %1098 = vmatpush1.msra.mxu0 0.0
        %1099 = vmatprep.subr.mxu0 0.0
        %1100 = vmatpush1.msra.mxu0 0.0
        %1101 = vmatprep.subr.mxu0 0.0
        %1102 = vmatpush1.msra.mxu0 0.0
        %1103 = vmatprep.subr.mxu0 0.0
        %1104 = vmatpush1.msra.mxu0 0.0
        %1105 = vmatprep.subr.mxu0 0.0
        %1106 = vmatpush1.msra.mxu0 0.0
        %1107 = vmatprep.subr.mxu0 0.0
        %1108 = vmatpush1.msra.mxu0 0.0
        %1109 = vmatprep.subr.mxu0 0.0
        %1110 = vmatpush1.msra.mxu0 0.0
        %1111 = vmatprep.subr.mxu0 0.0
        %1112 = vmatpush1.msra.mxu0 0.0
        %1113 = vmatprep.subr.mxu0 0.0
        %1114 = vmatpush1.msra.mxu0 0.0
        %1115 = vmatprep.subr.mxu0 0.0
        %1116 = vmatpush1.msra.mxu0 0.0
        %1117 = vmatprep.subr.mxu0 0.0
        %1118 = vmatpush1.msra.mxu0 0.0
        %1119 = vmatprep.subr.mxu0 0.0
        %1120 = vmatpush1.msra.mxu0 0.0
        %1121 = vmatprep.subr.mxu0 0.0
        %1122 = vmatpush1.msra.mxu0 0.0
        %1123 = vmatprep.subr.mxu0 0.0
        %1124 = vmatpush1.msra.mxu0 0.0
        %1125 = vmatprep.subr.mxu0 0.0
        %1126 = vmatpush1.msra.mxu0 0.0
        %1127 = vmatprep.subr.mxu0 0.0
        %1128 = vmatpush1.msra.mxu0 0.0
        %1129 = vmatprep.subr.mxu0 0.0
        %1130 = vmatpush1.msra.mxu0 0.0
        %1131 = vmatprep.mubr.f32.mxu0 0.0
        %1132 = vmatmul.mubr.f32.gmra.mrb[0].mxu0 %v1044
        %v1133 = vpop.f32.mrb[0].mxu0
        %v1134 = vadd.f32 0.0, %v1133
        %v1135 = vpop.f32.mrb[0].mxu0
        %1136 = vmatprep.mubr.f32.mxu0 0.0
        %1137 = vmatmul.mubr.f32.gmra.mrb[0].mxu0 %v1047
        %v1138 = vpop.f32.mrb[0].mxu0
        %v1139 = vadd.f32 0.0, %v1138
        %v1140 = vpop.f32.mrb[0].mxu0
        %1141 = vmatprep.mubr.f32.mxu0 0.0
        %1142 = vmatmul.mubr.f32.gmra.mrb[0].mxu0 %v1050
        %v1143 = vpop.f32.mrb[0].mxu0
        %v1144 = vadd.f32 0.0, %v1143
        %v1145 = vpop.f32.mrb[0].mxu0
        %1146 = vmatprep.mubr.f32.mxu0 0.0
        %1147 = vmatmul.mubr.f32.gmra.mrb[0].mxu0 %v1053
        %v1148 = vpop.f32.mrb[0].mxu0
        %v1149 = vadd.f32 0.0, %v1148
        %v1150 = vpop.f32.mrb[0].mxu0
        %1151 = vmatprep.mubr.f32.mxu0 0.0
        %1152 = vmatmul.mubr.f32.gmra.mrb[0].mxu0 %v1056
        %v1153 = vpop.f32.mrb[0].mxu0
        %v1154 = vadd.f32 0.0, %v1153
        %v1155 = vpop.f32.mrb[0].mxu0
        %1156 = vmatprep.mubr.f32.mxu0 0.0
        %1157 = vmatmul.mubr.f32.gmra.mrb[0].mxu0 %v1059
        %v1158 = vpop.f32.mrb[0].mxu0
        %v1159 = vadd.f32 0.0, %v1158
        %v1160 = vpop.f32.mrb[0].mxu0
        %1161 = vmatprep.mubr.f32.mxu0 0.0
        %1162 = vmatmul.mubr.f32.gmra.mrb[0].mxu0 %v1062
        %v1163 = vpop.f32.mrb[0].mxu0
        %v1164 = vadd.f32 0.0, %v1163
        %v1165 = vpop.f32.mrb[0].mxu0
        %1166 = vmatprep.mubr.f32.mxu0 0.0
        %1167 = vmatmul.mubr.f32.gmra.mrb[0].mxu0 %v1065
        %v1168 = vpop.f32.mrb[0].mxu0
        %v1169 = vadd.f32 0.0, %v1168
        %v1170 = vpop.f32.mrb[0].mxu0
        %1171 = vdwg.mxu0
        %v1172 = vld [vmem:[%s4] sm:$0xff]
        %v1173 = vld [vmem:[%s4 + $0x8] sm:$0xff]
        %v1174 = vld [vmem:[%s4 + $0x10] sm:$0xff]
        %v1175 = vld [vmem:[%s4 + $0x18] sm:$0xff]
        %v1176 = vld [vmem:[%s5] sm:$0x1]
        %v1178 = vlaneseq
        %v1179 = vshrl.u32 %v1178, 7
        %v1180 = vsub.s32 0, %v1179
        %v1181 = vrot.slane %v1176, %v1180
        %v1184 = vsel %vm504, %v1134, 0
        %v1187 = vsel %vm504, %v1139, 0
        %v1190 = vsel %vm504, %v1144, 0
        %v1193 = vsel %vm504, %v1149, 0
        %v1196 = vsel %vm504, %v1154, 0
        %v1199 = vsel %vm504, %v1159, 0
        %v1202 = vsel %vm504, %v1164, 0
        %v1205 = vsel %vm504, %v1169, 0
        %1207 = vmatprep.subr.mxu0 0.0
        %1208 = vmatpush1.msra.mxu0 %v1172
        %1209 = vmatprep.subr.mxu0 0.0
        %1210 = vmatpush1.msra.mxu0 %v1173
        %1211 = vmatprep.subr.mxu0 0.0
        %1212 = vmatpush1.msra.mxu0 %v1174
        %1213 = vmatprep.subr.mxu0 0.0
        %1214 = vmatpush1.msra.mxu0 %v1175
        %1215 = vmatprep.subr.mxu0 0.0
        %1216 = vmatpush1.msra.mxu0 0.0
        %1217 = vmatprep.subr.mxu0 0.0
        %1218 = vmatpush1.msra.mxu0 0.0
        %1219 = vmatprep.subr.mxu0 0.0
        %1220 = vmatpush1.msra.mxu0 0.0
        %1221 = vmatprep.subr.mxu0 0.0
        %1222 = vmatpush1.msra.mxu0 0.0
        %1223 = vmatprep.subr.mxu0 0.0
        %1224 = vmatpush1.msra.mxu0 0.0
        %1225 = vmatprep.subr.mxu0 0.0
        %1226 = vmatpush1.msra.mxu0 0.0
        %1227 = vmatprep.subr.mxu0 0.0
        %1228 = vmatpush1.msra.mxu0 0.0
        %1229 = vmatprep.subr.mxu0 0.0
        %1230 = vmatpush1.msra.mxu0 0.0
        %1231 = vmatprep.subr.mxu0 0.0
        %1232 = vmatpush1.msra.mxu0 0.0
        %1233 = vmatprep.subr.mxu0 0.0
        %1234 = vmatpush1.msra.mxu0 0.0
        %1235 = vmatprep.subr.mxu0 0.0
        %1236 = vmatpush1.msra.mxu0 0.0
        %1237 = vmatprep.subr.mxu0 0.0
        %1238 = vmatpush1.msra.mxu0 0.0
        %1239 = vmatprep.subr.mxu0 0.0
        %1240 = vmatpush1.msra.mxu0 0.0
        %1241 = vmatprep.subr.mxu0 0.0
        %1242 = vmatpush1.msra.mxu0 0.0
        %1243 = vmatprep.subr.mxu0 0.0
        %1244 = vmatpush1.msra.mxu0 0.0
        %1245 = vmatprep.subr.mxu0 0.0
        %1246 = vmatpush1.msra.mxu0 0.0
        %1247 = vmatprep.subr.mxu0 0.0
        %1248 = vmatpush1.msra.mxu0 0.0
        %1249 = vmatprep.subr.mxu0 0.0
        %1250 = vmatpush1.msra.mxu0 0.0
        %1251 = vmatprep.subr.mxu0 0.0
        %1252 = vmatpush1.msra.mxu0 0.0
        %1253 = vmatprep.subr.mxu0 0.0
        %1254 = vmatpush1.msra.mxu0 0.0
        %1255 = vmatprep.subr.mxu0 0.0
        %1256 = vmatpush1.msra.mxu0 0.0
        %1257 = vmatprep.subr.mxu0 0.0
        %1258 = vmatpush1.msra.mxu0 0.0
        %1259 = vmatprep.subr.mxu0 0.0
        %1260 = vmatpush1.msra.mxu0 0.0
        %1261 = vmatprep.subr.mxu0 0.0
        %1262 = vmatpush1.msra.mxu0 0.0
        %1263 = vmatprep.subr.mxu0 0.0
        %1264 = vmatpush1.msra.mxu0 0.0
        %1265 = vmatprep.subr.mxu0 0.0
        %1266 = vmatpush1.msra.mxu0 0.0
        %1267 = vmatprep.subr.mxu0 0.0
        %1268 = vmatpush1.msra.mxu0 0.0
        %1269 = vmatprep.subr.mxu0 0.0
        %1270 = vmatpush1.msra.mxu0 0.0
        %1271 = vmatprep.mubr.f32.mxu0 0.0
        %1272 = vmatmul.mubr.f32.gmra.mrb[0].mxu0 %v1184
        %v1273 = vpop.f32.mrb[0].mxu0
        %v1274 = vadd.f32 %v1181, %v1273
        %v1275 = vpop.f32.mrb[0].mxu0
        %1276 = vmatprep.mubr.f32.mxu0 0.0
        %1277 = vmatmul.mubr.f32.gmra.mrb[0].mxu0 %v1187
        %v1278 = vpop.f32.mrb[0].mxu0
        %v1279 = vadd.f32 %v1181, %v1278
        %v1280 = vpop.f32.mrb[0].mxu0
        %1281 = vmatprep.mubr.f32.mxu0 0.0
        %1282 = vmatmul.mubr.f32.gmra.mrb[0].mxu0 %v1190
        %v1283 = vpop.f32.mrb[0].mxu0
        %v1284 = vadd.f32 %v1181, %v1283
        %v1285 = vpop.f32.mrb[0].mxu0
        %1286 = vmatprep.mubr.f32.mxu0 0.0
        %1287 = vmatmul.mubr.f32.gmra.mrb[0].mxu0 %v1193
        %v1288 = vpop.f32.mrb[0].mxu0
        %v1289 = vadd.f32 %v1181, %v1288
        %v1290 = vpop.f32.mrb[0].mxu0
        %1291 = vmatprep.mubr.f32.mxu0 0.0
        %1292 = vmatmul.mubr.f32.gmra.mrb[0].mxu0 %v1196
        %v1293 = vpop.f32.mrb[0].mxu0
        %v1294 = vadd.f32 %v1181, %v1293
        %v1295 = vpop.f32.mrb[0].mxu0
        %1296 = vmatprep.mubr.f32.mxu0 0.0
        %1297 = vmatmul.mubr.f32.gmra.mrb[0].mxu0 %v1199
        %v1298 = vpop.f32.mrb[0].mxu0
        %v1299 = vadd.f32 %v1181, %v1298
        %v1300 = vpop.f32.mrb[0].mxu0
        %1301 = vmatprep.mubr.f32.mxu0 0.0
        %1302 = vmatmul.mubr.f32.gmra.mrb[0].mxu0 %v1202
        %v1303 = vpop.f32.mrb[0].mxu0
        %v1304 = vadd.f32 %v1181, %v1303
        %v1305 = vpop.f32.mrb[0].mxu0
        %1306 = vmatprep.mubr.f32.mxu0 0.0
        %1307 = vmatmul.mubr.f32.gmra.mrb[0].mxu0 %v1205
        %v1308 = vpop.f32.mrb[0].mxu0
        %v1309 = vadd.f32 %v1181, %v1308
        %v1310 = vpop.f32.mrb[0].mxu0
        %1311 = vdwg.mxu0
        %v1312 = vld [vmem:[%s6] sm:$0x1]
        %v1313 = vld [vmem:[%s7] sm:$0x1]
        %v1314 = vsel %vm945, %v1274, 0.0
        %1315 = vadd.xlane.f32.xlu0 %v1314
        %v1316 = vpop.xlane.xlu0 %1315
        %v1317 = vsel %vm945, %v1279, 0.0
        %1318 = vadd.xlane.f32.xlu0 %v1317
        %v1319 = vpop.xlane.xlu0 %1318
        %v1320 = vsel %vm945, %v1284, 0.0
        %1321 = vadd.xlane.f32.xlu0 %v1320
        %v1322 = vpop.xlane.xlu0 %1321
        %v1323 = vsel %vm945, %v1289, 0.0
        %1324 = vadd.xlane.f32.xlu0 %v1323
        %v1325 = vpop.xlane.xlu0 %1324
        %v1326 = vsel %vm945, %v1294, 0.0
        %1327 = vadd.xlane.f32.xlu0 %v1326
        %v1328 = vpop.xlane.xlu0 %1327
        %v1329 = vsel %vm945, %v1299, 0.0
        %1330 = vadd.xlane.f32.xlu0 %v1329
        %v1331 = vpop.xlane.xlu0 %1330
        %v1332 = vsel %vm945, %v1304, 0.0
        %1333 = vadd.xlane.f32.xlu0 %v1332
        %v1334 = vpop.xlane.xlu0 %1333
        %v1335 = vsel %vm945, %v1309, 0.0
        %1336 = vadd.xlane.f32.xlu0 %v1335
        %v1337 = vpop.xlane.xlu0 %1336
        %v1338 = vrcp.pop 64.0
        %v1339 = vmul.f32 %v1316, %v1338
        %v1340 = vmul.f32 %v1319, %v1338
        %v1341 = vmul.f32 %v1322, %v1338
        %v1342 = vmul.f32 %v1325, %v1338
        %v1343 = vmul.f32 %v1328, %v1338
        %v1344 = vmul.f32 %v1331, %v1338
        %v1345 = vmul.f32 %v1334, %v1338
        %v1346 = vmul.f32 %v1337, %v1338
        %v1347 = vsub.f32 %v1274, %v1339
        %v1348 = vsub.f32 %v1279, %v1340
        %v1349 = vsub.f32 %v1284, %v1341
        %v1350 = vsub.f32 %v1289, %v1342
        %v1351 = vsub.f32 %v1294, %v1343
        %v1352 = vsub.f32 %v1299, %v1344
        %v1353 = vsub.f32 %v1304, %v1345
        %v1354 = vsub.f32 %v1309, %v1346
        %v1355 = vmul.f32 %v1347, %v1347
        %v1356 = vmul.f32 %v1348, %v1348
        %v1357 = vmul.f32 %v1349, %v1349
        %v1358 = vmul.f32 %v1350, %v1350
        %v1359 = vmul.f32 %v1351, %v1351
        %v1360 = vmul.f32 %v1352, %v1352
        %v1361 = vmul.f32 %v1353, %v1353
        %v1362 = vmul.f32 %v1354, %v1354
        %v1363 = vsel %vm945, %v1355, 0.0
        %1364 = vadd.xlane.f32.xlu0 %v1363
        %v1365 = vpop.xlane.xlu0 %1364
        %v1366 = vsel %vm945, %v1356, 0.0
        %1367 = vadd.xlane.f32.xlu0 %v1366
        %v1368 = vpop.xlane.xlu0 %1367
        %v1369 = vsel %vm945, %v1357, 0.0
        %1370 = vadd.xlane.f32.xlu0 %v1369
        %v1371 = vpop.xlane.xlu0 %1370
        %v1372 = vsel %vm945, %v1358, 0.0
        %1373 = vadd.xlane.f32.xlu0 %v1372
        %v1374 = vpop.xlane.xlu0 %1373
        %v1375 = vsel %vm945, %v1359, 0.0
        %1376 = vadd.xlane.f32.xlu0 %v1375
        %v1377 = vpop.xlane.xlu0 %1376
        %v1378 = vsel %vm945, %v1360, 0.0
        %1379 = vadd.xlane.f32.xlu0 %v1378
        %v1380 = vpop.xlane.xlu0 %1379
        %v1381 = vsel %vm945, %v1361, 0.0
        %1382 = vadd.xlane.f32.xlu0 %v1381
        %v1383 = vpop.xlane.xlu0 %1382
        %v1384 = vsel %vm945, %v1362, 0.0
        %1385 = vadd.xlane.f32.xlu0 %v1384
        %v1386 = vpop.xlane.xlu0 %1385
        %v1387 = vmul.f32 %v1365, %v1338
        %v1388 = vmul.f32 %v1368, %v1338
        %v1389 = vmul.f32 %v1371, %v1338
        %v1390 = vmul.f32 %v1374, %v1338
        %v1391 = vmul.f32 %v1377, %v1338
        %v1392 = vmul.f32 %v1380, %v1338
        %v1393 = vmul.f32 %v1383, %v1338
        %v1394 = vmul.f32 %v1386, %v1338
        %v1395 = vadd.f32 %v1387, 1e-05
        %v1396 = vadd.f32 %v1388, 1e-05
        %v1397 = vadd.f32 %v1389, 1e-05
        %v1398 = vadd.f32 %v1390, 1e-05
        %v1399 = vadd.f32 %v1391, 1e-05
        %v1400 = vadd.f32 %v1392, 1e-05
        %v1401 = vadd.f32 %v1393, 1e-05
        %v1402 = vadd.f32 %v1394, 1e-05
        %v1403 = vrsqrt.pop %v1395
        %v1404 = vrsqrt.pop %v1396
        %v1405 = vrsqrt.pop %v1397
        %v1406 = vrsqrt.pop %v1398
        %v1407 = vrsqrt.pop %v1399
        %v1408 = vrsqrt.pop %v1400
        %v1409 = vrsqrt.pop %v1401
        %v1410 = vrsqrt.pop %v1402
        %v1411 = vmul.f32 %v1347, %v1403
        %v1412 = vmul.f32 %v1348, %v1404
        %v1413 = vmul.f32 %v1349, %v1405
        %v1414 = vmul.f32 %v1350, %v1406
        %v1415 = vmul.f32 %v1351, %v1407
        %v1416 = vmul.f32 %v1352, %v1408
        %v1417 = vmul.f32 %v1353, %v1409
        %v1418 = vmul.f32 %v1354, %v1410
        %v1420 = vlaneseq
        %v1421 = vshrl.u32 %v1420, 7
        %v1422 = vsub.s32 0, %v1421
        %v1423 = vrot.slane %v1312, %v1422
        %v1425 = vmul.f32 %v1411, %v1423
        %v1426 = vmul.f32 %v1412, %v1423
        %v1427 = vmul.f32 %v1413, %v1423
        %v1428 = vmul.f32 %v1414, %v1423
        %v1429 = vmul.f32 %v1415, %v1423
        %v1430 = vmul.f32 %v1416, %v1423
        %v1431 = vmul.f32 %v1417, %v1423
        %v1432 = vmul.f32 %v1418, %v1423
        %v1434 = vlaneseq
        %v1435 = vshrl.u32 %v1434, 7
        %v1436 = vsub.s32 0, %v1435
        %v1437 = vrot.slane %v1313, %v1436
        %v1439 = vadd.f32 %v1425, %v1437
        %v1440 = vadd.f32 %v1426, %v1437
        %v1441 = vadd.f32 %v1427, %v1437
        %v1442 = vadd.f32 %v1428, %v1437
        %v1443 = vadd.f32 %v1429, %v1437
        %v1444 = vadd.f32 %v1430, %v1437
        %v1445 = vadd.f32 %v1431, %v1437
        %v1446 = vadd.f32 %v1432, %v1437
        %v1447 = vlaneseq
        %v1448 = vshrl.u32 %v1447, 7
        %v1449 = vadd.s32 %v1448, 8
        %v1450 = vadd.s32 %v1448, 16
        %v1451 = vadd.s32 %v1448, 24
        %v1452 = vlaneseq
        %v1453 = vand.u32 %v1452, 127
        %vm1454 = vcmp.eq.s32.totalorder %v1453, %v1448
        %vm1455 = vcmp.eq.s32.totalorder %v1453, %v1449
        %vm1456 = vcmp.eq.s32.totalorder %v1453, %v1450
        %vm1457 = vcmp.eq.s32.totalorder %v1453, %v1451
        %v1458 = vsel %vm1454, 1, 0
        %v1459 = vsel %vm1455, 1, 0
        %v1460 = vsel %vm1456, 1, 0
        %v1461 = vsel %vm1457, 1, 0
        %v1462 = vcvt.s32.f32 %v1458
        %v1463 = vcvt.s32.f32 %v1459
        %v1464 = vcvt.s32.f32 %v1460
        %v1465 = vcvt.s32.f32 %v1461
        %v1466 = vadd.s32 %v1448, 32
        %v1467 = vadd.s32 %v1449, 32
        %v1468 = vadd.s32 %v1450, 32
        %v1469 = vadd.s32 %v1451, 32
        %vm1470 = vcmp.eq.s32.totalorder %v1453, %v1466
        %vm1471 = vcmp.eq.s32.totalorder %v1453, %v1467
        %vm1472 = vcmp.eq.s32.totalorder %v1453, %v1468
        %vm1473 = vcmp.eq.s32.totalorder %v1453, %v1469
        %v1474 = vsel %vm1470, 1, 0
        %v1475 = vsel %vm1471, 1, 0
        %v1476 = vsel %vm1472, 1, 0
        %v1477 = vsel %vm1473, 1, 0
        %v1478 = vcvt.s32.f32 %v1474
        %v1479 = vcvt.s32.f32 %v1475
        %v1480 = vcvt.s32.f32 %v1476
        %v1481 = vcvt.s32.f32 %v1477
        %v1483 = vsel %vm504, %v494, 0
        %v1486 = vsel %vm504, %v495, 0
        %v1489 = vsel %vm504, %v496, 0
        %v1492 = vsel %vm504, %v497, 0
        %v1495 = vsel %vm504, %v498, 0
        %v1498 = vsel %vm504, %v499, 0
        %v1501 = vsel %vm504, %v500, 0
        %v1504 = vsel %vm504, %v501, 0
        %1506 = vmatprep.subr.mxu0 0.0
        %1507 = vmatpush1.msra.mxu0 %v1478
        %1508 = vmatprep.subr.mxu0 0.0
        %1509 = vmatpush1.msra.mxu0 %v1479
        %1510 = vmatprep.subr.mxu0 0.0
        %1511 = vmatpush1.msra.mxu0 %v1480
        %1512 = vmatprep.subr.mxu0 0.0
        %1513 = vmatpush1.msra.mxu0 %v1481
        %1514 = vmatprep.subr.mxu0 0.0
        %1515 = vmatpush1.msra.mxu0 0.0
        %1516 = vmatprep.subr.mxu0 0.0
        %1517 = vmatpush1.msra.mxu0 0.0
        %1518 = vmatprep.subr.mxu0 0.0
        %1519 = vmatpush1.msra.mxu0 0.0
        %1520 = vmatprep.subr.mxu0 0.0
        %1521 = vmatpush1.msra.mxu0 0.0
        %1522 = vmatprep.subr.mxu0 0.0
        %1523 = vmatpush1.msra.mxu0 0.0
        %1524 = vmatprep.subr.mxu0 0.0
        %1525 = vmatpush1.msra.mxu0 0.0
        %1526 = vmatprep.subr.mxu0 0.0
        %1527 = vmatpush1.msra.mxu0 0.0
        %1528 = vmatprep.subr.mxu0 0.0
        %1529 = vmatpush1.msra.mxu0 0.0
        %1530 = vmatprep.subr.mxu0 0.0
        %1531 = vmatpush1.msra.mxu0 0.0
        %1532 = vmatprep.subr.mxu0 0.0
        %1533 = vmatpush1.msra.mxu0 0.0
        %1534 = vmatprep.subr.mxu0 0.0
        %1535 = vmatpush1.msra.mxu0 0.0
        %1536 = vmatprep.subr.mxu0 0.0
        %1537 = vmatpush1.msra.mxu0 0.0
        %1538 = vmatprep.subr.mxu0 0.0
        %1539 = vmatpush1.msra.mxu0 0.0
        %1540 = vmatprep.subr.mxu0 0.0
        %1541 = vmatpush1.msra.mxu0 0.0
        %1542 = vmatprep.subr.mxu0 0.0
        %1543 = vmatpush1.msra.mxu0 0.0
        %1544 = vmatprep.subr.mxu0 0.0
        %1545 = vmatpush1.msra.mxu0 0.0
        %1546 = vmatprep.subr.mxu0 0.0
        %1547 = vmatpush1.msra.mxu0 0.0
        %1548 = vmatprep.subr.mxu0 0.0
        %1549 = vmatpush1.msra.mxu0 0.0
        %1550 = vmatprep.subr.mxu0 0.0
        %1551 = vmatpush1.msra.mxu0 0.0
        %1552 = vmatprep.subr.mxu0 0.0
        %1553 = vmatpush1.msra.mxu0 0.0
        %1554 = vmatprep.subr.mxu0 0.0
        %1555 = vmatpush1.msra.mxu0 0.0
        %1556 = vmatprep.subr.mxu0 0.0
        %1557 = vmatpush1.msra.mxu0 0.0
        %1558 = vmatprep.subr.mxu0 0.0
        %1559 = vmatpush1.msra.mxu0 0.0
        %1560 = vmatprep.subr.mxu0 0.0
        %1561 = vmatpush1.msra.mxu0 0.0
        %1562 = vmatprep.subr.mxu0 0.0
        %1563 = vmatpush1.msra.mxu0 0.0
        %1564 = vmatprep.subr.mxu0 0.0
        %1565 = vmatpush1.msra.mxu0 0.0
        %1566 = vmatprep.subr.mxu0 0.0
        %1567 = vmatpush1.msra.mxu0 0.0
        %1568 = vmatprep.subr.mxu0 0.0
        %1569 = vmatpush1.msra.mxu0 0.0
        %1570 = vmatprep.mubr.f32.mxu0 0.0
        %1571 = vmatmul.mubr.f32.gmra.mrb[0].mxu0 %v1483
        %v1572 = vpop.f32.mrb[0].mxu0
        %v1573 = vadd.f32 0.0, %v1572
        %v1574 = vpop.f32.mrb[0].mxu0
        %1575 = vmatprep.mubr.f32.mxu0 0.0
        %1576 = vmatmul.mubr.f32.gmra.mrb[0].mxu0 %v1486
        %v1577 = vpop.f32.mrb[0].mxu0
        %v1578 = vadd.f32 0.0, %v1577
        %v1579 = vpop.f32.mrb[0].mxu0
        %1580 = vmatprep.mubr.f32.mxu0 0.0
        %1581 = vmatmul.mubr.f32.gmra.mrb[0].mxu0 %v1489
        %v1582 = vpop.f32.mrb[0].mxu0
        %v1583 = vadd.f32 0.0, %v1582
        %v1584 = vpop.f32.mrb[0].mxu0
        %1585 = vmatprep.mubr.f32.mxu0 0.0
        %1586 = vmatmul.mubr.f32.gmra.mrb[0].mxu0 %v1492
        %v1587 = vpop.f32.mrb[0].mxu0
        %v1588 = vadd.f32 0.0, %v1587
        %v1589 = vpop.f32.mrb[0].mxu0
        %1590 = vmatprep.mubr.f32.mxu0 0.0
        %1591 = vmatmul.mubr.f32.gmra.mrb[0].mxu0 %v1495
        %v1592 = vpop.f32.mrb[0].mxu0
        %v1593 = vadd.f32 0.0, %v1592
        %v1594 = vpop.f32.mrb[0].mxu0
        %1595 = vmatprep.mubr.f32.mxu0 0.0
        %1596 = vmatmul.mubr.f32.gmra.mrb[0].mxu0 %v1498
        %v1597 = vpop.f32.mrb[0].mxu0
        %v1598 = vadd.f32 0.0, %v1597
        %v1599 = vpop.f32.mrb[0].mxu0
        %1600 = vmatprep.mubr.f32.mxu0 0.0
        %1601 = vmatmul.mubr.f32.gmra.mrb[0].mxu0 %v1501
        %v1602 = vpop.f32.mrb[0].mxu0
        %v1603 = vadd.f32 0.0, %v1602
        %v1604 = vpop.f32.mrb[0].mxu0
        %1605 = vmatprep.mubr.f32.mxu0 0.0
        %1606 = vmatmul.mubr.f32.gmra.mrb[0].mxu0 %v1504
        %v1607 = vpop.f32.mrb[0].mxu0
        %v1608 = vadd.f32 0.0, %v1607
        %v1609 = vpop.f32.mrb[0].mxu0
        %1610 = vdwg.mxu0
        %v1612 = vsel %vm504, %v486, 0
        %v1615 = vsel %vm504, %v487, 0
        %v1618 = vsel %vm504, %v488, 0
        %v1621 = vsel %vm504, %v489, 0
        %v1624 = vsel %vm504, %v490, 0
        %v1627 = vsel %vm504, %v491, 0
        %v1630 = vsel %vm504, %v492, 0
        %v1633 = vsel %vm504, %v493, 0
        %1635 = vmatprep.subr.mxu0 0.0
        %1636 = vmatpush1.msra.mxu0 %v1462
        %1637 = vmatprep.subr.mxu0 0.0
        %1638 = vmatpush1.msra.mxu0 %v1463
        %1639 = vmatprep.subr.mxu0 0.0
        %1640 = vmatpush1.msra.mxu0 %v1464
        %1641 = vmatprep.subr.mxu0 0.0
        %1642 = vmatpush1.msra.mxu0 %v1465
        %1643 = vmatprep.subr.mxu0 0.0
        %1644 = vmatpush1.msra.mxu0 0.0
        %1645 = vmatprep.subr.mxu0 0.0
        %1646 = vmatpush1.msra.mxu0 0.0
        %1647 = vmatprep.subr.mxu0 0.0
        %1648 = vmatpush1.msra.mxu0 0.0
        %1649 = vmatprep.subr.mxu0 0.0
        %1650 = vmatpush1.msra.mxu0 0.0
        %1651 = vmatprep.subr.mxu0 0.0
        %1652 = vmatpush1.msra.mxu0 0.0
        %1653 = vmatprep.subr.mxu0 0.0
        %1654 = vmatpush1.msra.mxu0 0.0
        %1655 = vmatprep.subr.mxu0 0.0
        %1656 = vmatpush1.msra.mxu0 0.0
        %1657 = vmatprep.subr.mxu0 0.0
        %1658 = vmatpush1.msra.mxu0 0.0
        %1659 = vmatprep.subr.mxu0 0.0
        %1660 = vmatpush1.msra.mxu0 0.0
        %1661 = vmatprep.subr.mxu0 0.0
        %1662 = vmatpush1.msra.mxu0 0.0
        %1663 = vmatprep.subr.mxu0 0.0
        %1664 = vmatpush1.msra.mxu0 0.0
        %1665 = vmatprep.subr.mxu0 0.0
        %1666 = vmatpush1.msra.mxu0 0.0
        %1667 = vmatprep.subr.mxu0 0.0
        %1668 = vmatpush1.msra.mxu0 0.0
        %1669 = vmatprep.subr.mxu0 0.0
        %1670 = vmatpush1.msra.mxu0 0.0
        %1671 = vmatprep.subr.mxu0 0.0
        %1672 = vmatpush1.msra.mxu0 0.0
        %1673 = vmatprep.subr.mxu0 0.0
        %1674 = vmatpush1.msra.mxu0 0.0
        %1675 = vmatprep.subr.mxu0 0.0
        %1676 = vmatpush1.msra.mxu0 0.0
        %1677 = vmatprep.subr.mxu0 0.0
        %1678 = vmatpush1.msra.mxu0 0.0
        %1679 = vmatprep.subr.mxu0 0.0
        %1680 = vmatpush1.msra.mxu0 0.0
        %1681 = vmatprep.subr.mxu0 0.0
        %1682 = vmatpush1.msra.mxu0 0.0
        %1683 = vmatprep.subr.mxu0 0.0
        %1684 = vmatpush1.msra.mxu0 0.0
        %1685 = vmatprep.subr.mxu0 0.0
        %1686 = vmatpush1.msra.mxu0 0.0
        %1687 = vmatprep.subr.mxu0 0.0
        %1688 = vmatpush1.msra.mxu0 0.0
        %1689 = vmatprep.subr.mxu0 0.0
        %1690 = vmatpush1.msra.mxu0 0.0
        %1691 = vmatprep.subr.mxu0 0.0
        %1692 = vmatpush1.msra.mxu0 0.0
        %1693 = vmatprep.subr.mxu0 0.0
        %1694 = vmatpush1.msra.mxu0 0.0
        %1695 = vmatprep.subr.mxu0 0.0
        %1696 = vmatpush1.msra.mxu0 0.0
        %1697 = vmatprep.subr.mxu0 0.0
        %1698 = vmatpush1.msra.mxu0 0.0
        %1699 = vmatprep.mubr.f32.mxu0 0.0
        %1700 = vmatmul.mubr.f32.gmra.mrb[0].mxu0 %v1612
        %v1701 = vpop.f32.mrb[0].mxu0
        %v1702 = vadd.f32 %v1573, %v1701
        %v1703 = vpop.f32.mrb[0].mxu0
        %1704 = vmatprep.mubr.f32.mxu0 0.0
        %1705 = vmatmul.mubr.f32.gmra.mrb[0].mxu0 %v1615
        %v1706 = vpop.f32.mrb[0].mxu0
        %v1707 = vadd.f32 %v1578, %v1706
        %v1708 = vpop.f32.mrb[0].mxu0
        %1709 = vmatprep.mubr.f32.mxu0 0.0
        %1710 = vmatmul.mubr.f32.gmra.mrb[0].mxu0 %v1618
        %v1711 = vpop.f32.mrb[0].mxu0
        %v1712 = vadd.f32 %v1583, %v1711
        %v1713 = vpop.f32.mrb[0].mxu0
        %1714 = vmatprep.mubr.f32.mxu0 0.0
        %1715 = vmatmul.mubr.f32.gmra.mrb[0].mxu0 %v1621
        %v1716 = vpop.f32.mrb[0].mxu0
        %v1717 = vadd.f32 %v1588, %v1716
        %v1718 = vpop.f32.mrb[0].mxu0
        %1719 = vmatprep.mubr.f32.mxu0 0.0
        %1720 = vmatmul.mubr.f32.gmra.mrb[0].mxu0 %v1624
        %v1721 = vpop.f32.mrb[0].mxu0
        %v1722 = vadd.f32 %v1593, %v1721
        %v1723 = vpop.f32.mrb[0].mxu0
        %1724 = vmatprep.mubr.f32.mxu0 0.0
        %1725 = vmatmul.mubr.f32.gmra.mrb[0].mxu0 %v1627
        %v1726 = vpop.f32.mrb[0].mxu0
        %v1727 = vadd.f32 %v1598, %v1726
        %v1728 = vpop.f32.mrb[0].mxu0
        %1729 = vmatprep.mubr.f32.mxu0 0.0
        %1730 = vmatmul.mubr.f32.gmra.mrb[0].mxu0 %v1630
        %v1731 = vpop.f32.mrb[0].mxu0
        %v1732 = vadd.f32 %v1603, %v1731
        %v1733 = vpop.f32.mrb[0].mxu0
        %1734 = vmatprep.mubr.f32.mxu0 0.0
        %1735 = vmatmul.mubr.f32.gmra.mrb[0].mxu0 %v1633
        %v1736 = vpop.f32.mrb[0].mxu0
        %v1737 = vadd.f32 %v1608, %v1736
        %v1738 = vpop.f32.mrb[0].mxu0
        %1739 = vdwg.mxu0
        %v1740 = vadd.f32 %v1702, %v1439
        %v1741 = vadd.f32 %v1707, %v1440
        %v1742 = vadd.f32 %v1712, %v1441
        %v1743 = vadd.f32 %v1717, %v1442
        %v1744 = vadd.f32 %v1722, %v1443
        %v1745 = vadd.f32 %v1727, %v1444
        %v1746 = vadd.f32 %v1732, %v1445
        %v1747 = vadd.f32 %v1737, %v1446
        %v1748 = vld [vmem:[%s8] sm:$0x1]
        %v1749 = vld [vmem:[%s9] sm:$0x1]
        %v1750 = vsel %vm945, %v1740, 0.0
        %1751 = vadd.xlane.f32.xlu0 %v1750
        %v1752 = vpop.xlane.xlu0 %1751
        %v1753 = vsel %vm945, %v1741, 0.0
        %1754 = vadd.xlane.f32.xlu0 %v1753
        %v1755 = vpop.xlane.xlu0 %1754
        %v1756 = vsel %vm945, %v1742, 0.0
        %1757 = vadd.xlane.f32.xlu0 %v1756
        %v1758 = vpop.xlane.xlu0 %1757
        %v1759 = vsel %vm945, %v1743, 0.0
        %1760 = vadd.xlane.f32.xlu0 %v1759
        %v1761 = vpop.xlane.xlu0 %1760
        %v1762 = vsel %vm945, %v1744, 0.0
        %1763 = vadd.xlane.f32.xlu0 %v1762
        %v1764 = vpop.xlane.xlu0 %1763
        %v1765 = vsel %vm945, %v1745, 0.0
        %1766 = vadd.xlane.f32.xlu0 %v1765
        %v1767 = vpop.xlane.xlu0 %1766
        %v1768 = vsel %vm945, %v1746, 0.0
        %1769 = vadd.xlane.f32.xlu0 %v1768
        %v1770 = vpop.xlane.xlu0 %1769
        %v1771 = vsel %vm945, %v1747, 0.0
        %1772 = vadd.xlane.f32.xlu0 %v1771
        %v1773 = vpop.xlane.xlu0 %1772
        %v1774 = vmul.f32 %v1752, %v1338
        %v1775 = vmul.f32 %v1755, %v1338
        %v1776 = vmul.f32 %v1758, %v1338
        %v1777 = vmul.f32 %v1761, %v1338
        %v1778 = vmul.f32 %v1764, %v1338
        %v1779 = vmul.f32 %v1767, %v1338
        %v1780 = vmul.f32 %v1770, %v1338
        %v1781 = vmul.f32 %v1773, %v1338
        %v1782 = vsub.f32 %v1740, %v1774
        %v1783 = vsub.f32 %v1741, %v1775
        %v1784 = vsub.f32 %v1742, %v1776
        %v1785 = vsub.f32 %v1743, %v1777
        %v1786 = vsub.f32 %v1744, %v1778
        %v1787 = vsub.f32 %v1745, %v1779
        %v1788 = vsub.f32 %v1746, %v1780
        %v1789 = vsub.f32 %v1747, %v1781
        %v1790 = vmul.f32 %v1782, %v1782
        %v1791 = vmul.f32 %v1783, %v1783
        %v1792 = vmul.f32 %v1784, %v1784
        %v1793 = vmul.f32 %v1785, %v1785
        %v1794 = vmul.f32 %v1786, %v1786
        %v1795 = vmul.f32 %v1787, %v1787
        %v1796 = vmul.f32 %v1788, %v1788
        %v1797 = vmul.f32 %v1789, %v1789
        %v1798 = vsel %vm945, %v1790, 0.0
        %1799 = vadd.xlane.f32.xlu0 %v1798
        %v1800 = vpop.xlane.xlu0 %1799
        %v1801 = vsel %vm945, %v1791, 0.0
        %1802 = vadd.xlane.f32.xlu0 %v1801
        %v1803 = vpop.xlane.xlu0 %1802
        %v1804 = vsel %vm945, %v1792, 0.0
        %1805 = vadd.xlane.f32.xlu0 %v1804
        %v1806 = vpop.xlane.xlu0 %1805
        %v1807 = vsel %vm945, %v1793, 0.0
        %1808 = vadd.xlane.f32.xlu0 %v1807
        %v1809 = vpop.xlane.xlu0 %1808
        %v1810 = vsel %vm945, %v1794, 0.0
        %1811 = vadd.xlane.f32.xlu0 %v1810
        %v1812 = vpop.xlane.xlu0 %1811
        %v1813 = vsel %vm945, %v1795, 0.0
        %1814 = vadd.xlane.f32.xlu0 %v1813
        %v1815 = vpop.xlane.xlu0 %1814
        %v1816 = vsel %vm945, %v1796, 0.0
        %1817 = vadd.xlane.f32.xlu0 %v1816
        %v1818 = vpop.xlane.xlu0 %1817
        %v1819 = vsel %vm945, %v1797, 0.0
        %1820 = vadd.xlane.f32.xlu0 %v1819
        %v1821 = vpop.xlane.xlu0 %1820
        %v1822 = vmul.f32 %v1800, %v1338
        %v1823 = vmul.f32 %v1803, %v1338
        %v1824 = vmul.f32 %v1806, %v1338
        %v1825 = vmul.f32 %v1809, %v1338
        %v1826 = vmul.f32 %v1812, %v1338
        %v1827 = vmul.f32 %v1815, %v1338
        %v1828 = vmul.f32 %v1818, %v1338
        %v1829 = vmul.f32 %v1821, %v1338
        %v1830 = vadd.f32 %v1822, 1e-05
        %v1831 = vadd.f32 %v1823, 1e-05
        %v1832 = vadd.f32 %v1824, 1e-05
        %v1833 = vadd.f32 %v1825, 1e-05
        %v1834 = vadd.f32 %v1826, 1e-05
        %v1835 = vadd.f32 %v1827, 1e-05
        %v1836 = vadd.f32 %v1828, 1e-05
        %v1837 = vadd.f32 %v1829, 1e-05
        %v1838 = vrsqrt.pop %v1830
        %v1839 = vrsqrt.pop %v1831
        %v1840 = vrsqrt.pop %v1832
        %v1841 = vrsqrt.pop %v1833
        %v1842 = vrsqrt.pop %v1834
        %v1843 = vrsqrt.pop %v1835
        %v1844 = vrsqrt.pop %v1836
        %v1845 = vrsqrt.pop %v1837
        %v1846 = vmul.f32 %v1782, %v1838
        %v1847 = vmul.f32 %v1783, %v1839
        %v1848 = vmul.f32 %v1784, %v1840
        %v1849 = vmul.f32 %v1785, %v1841
        %v1850 = vmul.f32 %v1786, %v1842
        %v1851 = vmul.f32 %v1787, %v1843
        %v1852 = vmul.f32 %v1788, %v1844
        %v1853 = vmul.f32 %v1789, %v1845
        %v1855 = vlaneseq
        %v1856 = vshrl.u32 %v1855, 7
        %v1857 = vsub.s32 0, %v1856
        %v1858 = vrot.slane %v1748, %v1857
        %v1860 = vmul.f32 %v1846, %v1858
        %v1861 = vmul.f32 %v1847, %v1858
        %v1862 = vmul.f32 %v1848, %v1858
        %v1863 = vmul.f32 %v1849, %v1858
        %v1864 = vmul.f32 %v1850, %v1858
        %v1865 = vmul.f32 %v1851, %v1858
        %v1866 = vmul.f32 %v1852, %v1858
        %v1867 = vmul.f32 %v1853, %v1858
        %v1869 = vlaneseq
        %v1870 = vshrl.u32 %v1869, 7
        %v1871 = vsub.s32 0, %v1870
        %v1872 = vrot.slane %v1749, %v1871
        %v1874 = vadd.f32 %v1860, %v1872
        %v1875 = vadd.f32 %v1861, %v1872
        %v1876 = vadd.f32 %v1862, %v1872
        %v1877 = vadd.f32 %v1863, %v1872
        %v1878 = vadd.f32 %v1864, %v1872
        %v1879 = vadd.f32 %v1865, %v1872
        %v1880 = vadd.f32 %v1866, %v1872
        %v1881 = vadd.f32 %v1867, %v1872
        %v1882 = vld [vmem:[%s10] sm:$0xff]
        %v1883 = vld [vmem:[%s10 + $0x8] sm:$0xff]
        %v1884 = vld [vmem:[%s10 + $0x10] sm:$0xff]
        %v1885 = vld [vmem:[%s10 + $0x18] sm:$0xff]
        %v1886 = vld [vmem:[%s10 + $0x20] sm:$0xff]
        %v1887 = vld [vmem:[%s10 + $0x28] sm:$0xff]
        %v1888 = vld [vmem:[%s10 + $0x30] sm:$0xff]
        %v1889 = vld [vmem:[%s10 + $0x38] sm:$0xff]
        %v1890 = vld [vmem:[%s11] sm:$0x1]
        %v1892 = vlaneseq
        %v1893 = vshrl.u32 %v1892, 7
        %v1894 = vsub.s32 0, %v1893
        %v1895 = vrot.slane %v1890, %v1894
        %v1898 = vsel %vm945, %v1874, 0
        %v1901 = vsel %vm945, %v1875, 0
        %v1904 = vsel %vm945, %v1876, 0
        %v1907 = vsel %vm945, %v1877, 0
        %v1910 = vsel %vm945, %v1878, 0
        %v1913 = vsel %vm945, %v1879, 0
        %v1916 = vsel %vm945, %v1880, 0
        %v1919 = vsel %vm945, %v1881, 0
        %1921 = vmatprep.subr.mxu0 0.0
        %1922 = vmatpush1.msra.mxu0 %v1882
        %1923 = vmatprep.subr.mxu0 0.0
        %1924 = vmatpush1.msra.mxu0 %v1883
        %1925 = vmatprep.subr.mxu0 0.0
        %1926 = vmatpush1.msra.mxu0 %v1884
        %1927 = vmatprep.subr.mxu0 0.0
        %1928 = vmatpush1.msra.mxu0 %v1885
        %1929 = vmatprep.subr.mxu0 0.0
        %1930 = vmatpush1.msra.mxu0 %v1886
        %1931 = vmatprep.subr.mxu0 0.0
        %1932 = vmatpush1.msra.mxu0 %v1887
        %1933 = vmatprep.subr.mxu0 0.0
        %1934 = vmatpush1.msra.mxu0 %v1888
        %1935 = vmatprep.subr.mxu0 0.0
        %1936 = vmatpush1.msra.mxu0 %v1889
        %1937 = vmatprep.subr.mxu0 0.0
        %1938 = vmatpush1.msra.mxu0 0.0
        %1939 = vmatprep.subr.mxu0 0.0
        %1940 = vmatpush1.msra.mxu0 0.0
        %1941 = vmatprep.subr.mxu0 0.0
        %1942 = vmatpush1.msra.mxu0 0.0
        %1943 = vmatprep.subr.mxu0 0.0
        %1944 = vmatpush1.msra.mxu0 0.0
        %1945 = vmatprep.subr.mxu0 0.0
        %1946 = vmatpush1.msra.mxu0 0.0
        %1947 = vmatprep.subr.mxu0 0.0
        %1948 = vmatpush1.msra.mxu0 0.0
        %1949 = vmatprep.subr.mxu0 0.0
        %1950 = vmatpush1.msra.mxu0 0.0
        %1951 = vmatprep.subr.mxu0 0.0
        %1952 = vmatpush1.msra.mxu0 0.0
        %1953 = vmatprep.subr.mxu0 0.0
        %1954 = vmatpush1.msra.mxu0 0.0
        %1955 = vmatprep.subr.mxu0 0.0
        %1956 = vmatpush1.msra.mxu0 0.0
        %1957 = vmatprep.subr.mxu0 0.0
        %1958 = vmatpush1.msra.mxu0 0.0
        %1959 = vmatprep.subr.mxu0 0.0
        %1960 = vmatpush1.msra.mxu0 0.0
        %1961 = vmatprep.subr.mxu0 0.0
        %1962 = vmatpush1.msra.mxu0 0.0
        %1963 = vmatprep.subr.mxu0 0.0
        %1964 = vmatpush1.msra.mxu0 0.0
        %1965 = vmatprep.subr.mxu0 0.0
        %1966 = vmatpush1.msra.mxu0 0.0
        %1967 = vmatprep.subr.mxu0 0.0
        %1968 = vmatpush1.msra.mxu0 0.0
        %1969 = vmatprep.subr.mxu0 0.0
        %1970 = vmatpush1.msra.mxu0 0.0
        %1971 = vmatprep.subr.mxu0 0.0
        %1972 = vmatpush1.msra.mxu0 0.0
        %1973 = vmatprep.subr.mxu0 0.0
        %1974 = vmatpush1.msra.mxu0 0.0
        %1975 = vmatprep.subr.mxu0 0.0
        %1976 = vmatpush1.msra.mxu0 0.0
        %1977 = vmatprep.subr.mxu0 0.0
        %1978 = vmatpush1.msra.mxu0 0.0
        %1979 = vmatprep.subr.mxu0 0.0
        %1980 = vmatpush1.msra.mxu0 0.0
        %1981 = vmatprep.subr.mxu0 0.0
        %1982 = vmatpush1.msra.mxu0 0.0
        %1983 = vmatprep.subr.mxu0 0.0
        %1984 = vmatpush1.msra.mxu0 0.0
        %1985 = vmatprep.mubr.f32.mxu0 0.0
        %1986 = vmatmul.mubr.f32.gmra.mrb[0].mxu0 %v1898
        %v1987 = vpop.f32.mrb[0].mxu0
        %v1988 = vadd.f32 %v1895, %v1987
        %v1989 = vpop.f32.mrb[0].mxu0
        %1990 = vmatprep.mubr.f32.mxu0 0.0
        %1991 = vmatmul.mubr.f32.gmra.mrb[0].mxu0 %v1901
        %v1992 = vpop.f32.mrb[0].mxu0
        %v1993 = vadd.f32 %v1895, %v1992
        %v1994 = vpop.f32.mrb[0].mxu0
        %1995 = vmatprep.mubr.f32.mxu0 0.0
        %1996 = vmatmul.mubr.f32.gmra.mrb[0].mxu0 %v1904
        %v1997 = vpop.f32.mrb[0].mxu0
        %v1998 = vadd.f32 %v1895, %v1997
        %v1999 = vpop.f32.mrb[0].mxu0
        %2000 = vmatprep.mubr.f32.mxu0 0.0
        %2001 = vmatmul.mubr.f32.gmra.mrb[0].mxu0 %v1907
        %v2002 = vpop.f32.mrb[0].mxu0
        %v2003 = vadd.f32 %v1895, %v2002
        %v2004 = vpop.f32.mrb[0].mxu0
        %2005 = vmatprep.mubr.f32.mxu0 0.0
        %2006 = vmatmul.mubr.f32.gmra.mrb[0].mxu0 %v1910
        %v2007 = vpop.f32.mrb[0].mxu0
        %v2008 = vadd.f32 %v1895, %v2007
        %v2009 = vpop.f32.mrb[0].mxu0
        %2010 = vmatprep.mubr.f32.mxu0 0.0
        %2011 = vmatmul.mubr.f32.gmra.mrb[0].mxu0 %v1913
        %v2012 = vpop.f32.mrb[0].mxu0
        %v2013 = vadd.f32 %v1895, %v2012
        %v2014 = vpop.f32.mrb[0].mxu0
        %2015 = vmatprep.mubr.f32.mxu0 0.0
        %2016 = vmatmul.mubr.f32.gmra.mrb[0].mxu0 %v1916
        %v2017 = vpop.f32.mrb[0].mxu0
        %v2018 = vadd.f32 %v1895, %v2017
        %v2019 = vpop.f32.mrb[0].mxu0
        %2020 = vmatprep.mubr.f32.mxu0 0.0
        %2021 = vmatmul.mubr.f32.gmra.mrb[0].mxu0 %v1919
        %v2022 = vpop.f32.mrb[0].mxu0
        %v2023 = vadd.f32 %v1895, %v2022
        %v2024 = vpop.f32.mrb[0].mxu0
        %2025 = vdwg.mxu0
        %v2026 = vmul.f32 %v1988, 0.5
        %v2027 = vmul.f32 %v1993, 0.5
        %v2028 = vmul.f32 %v1998, 0.5
        %v2029 = vmul.f32 %v2003, 0.5
        %v2030 = vmul.f32 %v2008, 0.5
        %v2031 = vmul.f32 %v2013, 0.5
        %v2032 = vmul.f32 %v2018, 0.5
        %v2033 = vmul.f32 %v2023, 0.5
        %v2034 = vmul.f32 %v1988, 0.70710677
        %v2035 = vmul.f32 %v1993, 0.70710677
        %v2036 = vmul.f32 %v1998, 0.70710677
        %v2037 = vmul.f32 %v2003, 0.70710677
        %v2038 = vmul.f32 %v2008, 0.70710677
        %v2039 = vmul.f32 %v2013, 0.70710677
        %v2040 = vmul.f32 %v2018, 0.70710677
        %v2041 = vmul.f32 %v2023, 0.70710677
        %v2042 = verf.f32.pop %v2034
        %v2043 = verf.f32.pop %v2035
        %v2044 = verf.f32.pop %v2036
        %v2045 = verf.f32.pop %v2037
        %v2046 = verf.f32.pop %v2038
        %v2047 = verf.f32.pop %v2039
        %v2048 = verf.f32.pop %v2040
        %v2049 = verf.f32.pop %v2041
        %v2050 = vadd.f32 %v2042, 1.0
        %v2051 = vadd.f32 %v2043, 1.0
        %v2052 = vadd.f32 %v2044, 1.0
        %v2053 = vadd.f32 %v2045, 1.0
        %v2054 = vadd.f32 %v2046, 1.0
        %v2055 = vadd.f32 %v2047, 1.0
        %v2056 = vadd.f32 %v2048, 1.0
        %v2057 = vadd.f32 %v2049, 1.0
        %v2058 = vmul.f32 %v2026, %v2050
        %v2059 = vmul.f32 %v2027, %v2051
        %v2060 = vmul.f32 %v2028, %v2052
        %v2061 = vmul.f32 %v2029, %v2053
        %v2062 = vmul.f32 %v2030, %v2054
        %v2063 = vmul.f32 %v2031, %v2055
        %v2064 = vmul.f32 %v2032, %v2056
        %v2065 = vmul.f32 %v2033, %v2057
        %v2066 = vld [vmem:[%s12] sm:$0xff]
        %v2067 = vld [vmem:[%s12 + $0x8] sm:$0xff]
        %v2068 = vld [vmem:[%s12 + $0x10] sm:$0xff]
        %v2069 = vld [vmem:[%s12 + $0x18] sm:$0xff]
        %v2070 = vld [vmem:[%s12 + $0x20] sm:$0xff]
        %v2071 = vld [vmem:[%s12 + $0x28] sm:$0xff]
        %v2072 = vld [vmem:[%s12 + $0x30] sm:$0xff]
        %v2073 = vld [vmem:[%s12 + $0x38] sm:$0xff]
        %v2074 = vld [vmem:[%s12 + $0x40] sm:$0xff]
        %v2075 = vld [vmem:[%s12 + $0x48] sm:$0xff]
        %v2076 = vld [vmem:[%s12 + $0x50] sm:$0xff]
        %v2077 = vld [vmem:[%s12 + $0x58] sm:$0xff]
        %v2078 = vld [vmem:[%s12 + $0x60] sm:$0xff]
        %v2079 = vld [vmem:[%s12 + $0x68] sm:$0xff]
        %v2080 = vld [vmem:[%s12 + $0x70] sm:$0xff]
        %v2081 = vld [vmem:[%s12 + $0x78] sm:$0xff]
        %v2082 = vld [vmem:[%s13] sm:$0x1]
        %v2084 = vlaneseq
        %v2085 = vshrl.u32 %v2084, 7
        %v2086 = vsub.s32 0, %v2085
        %v2087 = vrot.slane %v2082, %v2086
        %2089 = vmatprep.subr.mxu0 0.0
        %2090 = vmatpush1.msra.mxu0 %v2066
        %2091 = vmatprep.subr.mxu0 0.0
        %2092 = vmatpush1.msra.mxu0 %v2067
        %2093 = vmatprep.subr.mxu0 0.0
        %2094 = vmatpush1.msra.mxu0 %v2068
        %2095 = vmatprep.subr.mxu0 0.0
        %2096 = vmatpush1.msra.mxu0 %v2069
        %2097 = vmatprep.subr.mxu0 0.0
        %2098 = vmatpush1.msra.mxu0 %v2070
        %2099 = vmatprep.subr.mxu0 0.0
        %2100 = vmatpush1.msra.mxu0 %v2071
        %2101 = vmatprep.subr.mxu0 0.0
        %2102 = vmatpush1.msra.mxu0 %v2072
        %2103 = vmatprep.subr.mxu0 0.0
        %2104 = vmatpush1.msra.mxu0 %v2073
        %2105 = vmatprep.subr.mxu0 0.0
        %2106 = vmatpush1.msra.mxu0 %v2074
        %2107 = vmatprep.subr.mxu0 0.0
        %2108 = vmatpush1.msra.mxu0 %v2075
        %2109 = vmatprep.subr.mxu0 0.0
        %2110 = vmatpush1.msra.mxu0 %v2076
        %2111 = vmatprep.subr.mxu0 0.0
        %2112 = vmatpush1.msra.mxu0 %v2077
        %2113 = vmatprep.subr.mxu0 0.0
        %2114 = vmatpush1.msra.mxu0 %v2078
        %2115 = vmatprep.subr.mxu0 0.0
        %2116 = vmatpush1.msra.mxu0 %v2079
        %2117 = vmatprep.subr.mxu0 0.0
        %2118 = vmatpush1.msra.mxu0 %v2080
        %2119 = vmatprep.subr.mxu0 0.0
        %2120 = vmatpush1.msra.mxu0 %v2081
        %2121 = vmatprep.subr.mxu0 0.0
        %2122 = vmatpush1.msra.mxu0 0.0
        %2123 = vmatprep.subr.mxu0 0.0
        %2124 = vmatpush1.msra.mxu0 0.0
        %2125 = vmatprep.subr.mxu0 0.0
        %2126 = vmatpush1.msra.mxu0 0.0
        %2127 = vmatprep.subr.mxu0 0.0
        %2128 = vmatpush1.msra.mxu0 0.0
        %2129 = vmatprep.subr.mxu0 0.0
        %2130 = vmatpush1.msra.mxu0 0.0
        %2131 = vmatprep.subr.mxu0 0.0
        %2132 = vmatpush1.msra.mxu0 0.0
        %2133 = vmatprep.subr.mxu0 0.0
        %2134 = vmatpush1.msra.mxu0 0.0
        %2135 = vmatprep.subr.mxu0 0.0
        %2136 = vmatpush1.msra.mxu0 0.0
        %2137 = vmatprep.subr.mxu0 0.0
        %2138 = vmatpush1.msra.mxu0 0.0
        %2139 = vmatprep.subr.mxu0 0.0
        %2140 = vmatpush1.msra.mxu0 0.0
        %2141 = vmatprep.subr.mxu0 0.0
        %2142 = vmatpush1.msra.mxu0 0.0
        %2143 = vmatprep.subr.mxu0 0.0
        %2144 = vmatpush1.msra.mxu0 0.0
        %2145 = vmatprep.subr.mxu0 0.0
        %2146 = vmatpush1.msra.mxu0 0.0
        %2147 = vmatprep.subr.mxu0 0.0
        %2148 = vmatpush1.msra.mxu0 0.0
        %2149 = vmatprep.subr.mxu0 0.0
        %2150 = vmatpush1.msra.mxu0 0.0
        %2151 = vmatprep.subr.mxu0 0.0
        %2152 = vmatpush1.msra.mxu0 0.0
        %2153 = vmatprep.mubr.f32.mxu0 0.0
        %2154 = vmatmul.mubr.f32.gmra.mrb[0].mxu0 %v2058
        %v2155 = vpop.f32.mrb[0].mxu0
        %v2156 = vadd.f32 %v2087, %v2155
        %v2157 = vpop.f32.mrb[0].mxu0
        %2158 = vmatprep.mubr.f32.mxu0 0.0
        %2159 = vmatmul.mubr.f32.gmra.mrb[0].mxu0 %v2059
        %v2160 = vpop.f32.mrb[0].mxu0
        %v2161 = vadd.f32 %v2087, %v2160
        %v2162 = vpop.f32.mrb[0].mxu0
        %2163 = vmatprep.mubr.f32.mxu0 0.0
        %2164 = vmatmul.mubr.f32.gmra.mrb[0].mxu0 %v2060
        %v2165 = vpop.f32.mrb[0].mxu0
        %v2166 = vadd.f32 %v2087, %v2165
        %v2167 = vpop.f32.mrb[0].mxu0
        %2168 = vmatprep.mubr.f32.mxu0 0.0
        %2169 = vmatmul.mubr.f32.gmra.mrb[0].mxu0 %v2061
        %v2170 = vpop.f32.mrb[0].mxu0
        %v2171 = vadd.f32 %v2087, %v2170
        %v2172 = vpop.f32.mrb[0].mxu0
        %2173 = vmatprep.mubr.f32.mxu0 0.0
        %2174 = vmatmul.mubr.f32.gmra.mrb[0].mxu0 %v2062
        %v2175 = vpop.f32.mrb[0].mxu0
        %v2176 = vadd.f32 %v2087, %v2175
        %v2177 = vpop.f32.mrb[0].mxu0
        %2178 = vmatprep.mubr.f32.mxu0 0.0
        %2179 = vmatmul.mubr.f32.gmra.mrb[0].mxu0 %v2063
        %v2180 = vpop.f32.mrb[0].mxu0
        %v2181 = vadd.f32 %v2087, %v2180
        %v2182 = vpop.f32.mrb[0].mxu0
        %2183 = vmatprep.mubr.f32.mxu0 0.0
        %2184 = vmatmul.mubr.f32.gmra.mrb[0].mxu0 %v2064
        %v2185 = vpop.f32.mrb[0].mxu0
        %v2186 = vadd.f32 %v2087, %v2185
        %v2187 = vpop.f32.mrb[0].mxu0
        %2188 = vmatprep.mubr.f32.mxu0 0.0
        %2189 = vmatmul.mubr.f32.gmra.mrb[0].mxu0 %v2065
        %v2190 = vpop.f32.mrb[0].mxu0
        %v2191 = vadd.f32 %v2087, %v2190
        %v2192 = vpop.f32.mrb[0].mxu0
        %2193 = vdwg.mxu0
        %v2194 = vadd.f32 %v1740, %v2156
        %v2195 = vadd.f32 %v1741, %v2161
        %v2196 = vadd.f32 %v1742, %v2166
        %v2197 = vadd.f32 %v1743, %v2171
        %v2198 = vadd.f32 %v1744, %v2176
        %v2199 = vadd.f32 %v1745, %v2181
        %v2200 = vadd.f32 %v1746, %v2186
        %v2201 = vadd.f32 %v1747, %v2191
        %2202 = vst.msk [vmem:[%s475] sm:$0xff] %vm945, %v2194
        %2203 = vst.msk [vmem:[%s475 + $0x8] sm:$0xff] %vm945, %v2195
        %2204 = vst.msk [vmem:[%s475 + $0x10] sm:$0xff] %vm945, %v2196
        %2205 = vst.msk [vmem:[%s475 + $0x18] sm:$0xff] %vm945, %v2197
        %2206 = vst.msk [vmem:[%s475 + $0x20] sm:$0xff] %vm945, %v2198
        %2207 = vst.msk [vmem:[%s475 + $0x28] sm:$0xff] %vm945, %v2199
        %2208 = vst.msk [vmem:[%s475 + $0x30] sm:$0xff] %vm945, %v2200
        %2209 = vst.msk [vmem:[%s475 + $0x38] sm:$0xff] %vm945, %v2201
        %s2210 = sand.u32 %s340, 1
        %s2211 = scalar_lea.sflag [#allocation3], %s2210
        %s2212 = sand.u32 %s340, 1
        %s2213 = smul.addr %s2212, 64
        %s2214 = scalar_lea.vmem [#allocation2], %s2213
        // Predicated region
        $region77: #{tpu_custom_call.1} parent=75 // pred_check
          %p2215 = pneg %p350
        $region78: #{tpu_custom_call.1} parent=75 // pred_check_branch
          %2217 = sbr.rel (%p2215) target = $region80
        $region79: #{tpu_custom_call.1} parent=75 // pred_region
          %s2219 = ssub.s32 1024, 1024
          %2220 = vsyncadd %s2211, %s2219
          %s2221 = smul.addr %s28, 8
          %s2222 = smul.addr %s2221, 128
          %s2223 = scalar_lea.hbm %s14, %s2222
          %s2224 = sshll.u32 %s2214, 4
          %s2225 = int_to_ptr.vmem [resolvable:$true] %s2224
          %2230 = dma.vmem_to_hbm [thread:$0]  %s2225, 1024, %s2223, %s2211, 128, 128, 8
        $region80: #{tpu_custom_call.1} parent=75 // pred_fallthru
          _
      $region76: #{tpu_custom_call.1} parent=5 // pred_fallthru
        _
      %p2231 = scmp.le.s32.totalorder 2, %s23
      // Predicated region
      $region81: #{tpu_custom_call.1} parent=5 // pred_check
        %p2232 = pneg %p2231
      $region82: #{tpu_custom_call.1} parent=5 // pred_check_branch
        %2234 = sbr.rel (%p2232) target = $region84
      $region83: #{tpu_custom_call.1} parent=5 // pred_region
        %s2235 = ssub.s32 %s23, 2
        // Predicated region
        $region85: #{tpu_custom_call.1} parent=83 // pred_check
          %p2236 = pneg %p356
        $region86: #{tpu_custom_call.1} parent=83 // pred_check_branch
          %2238 = sbr.rel (%p2236) target = $region88
        $region87: #{tpu_custom_call.1} parent=83 // pred_region
          %s2239 = sand.u32 %s341, 1
          %s2240 = scalar_lea.sflag [#allocation3], %s2239
          %s2241 = sand.u32 %s341, 1
          %s2242 = smul.addr %s2241, 64
          %s2243 = scalar_lea.vmem [#allocation2], %s2242
          %2244 = dma.done %s2240, 1024
        $region88: #{tpu_custom_call.1} parent=83 // pred_fallthru
          _
      $region84: #{tpu_custom_call.1} parent=5 // pred_fallthru
        _
    $region6: #{tpu_custom_call.1} parent=1 // loop_footer
      %s27 = sadd.s32 1, %s23
    $region7: #{tpu_custom_call.1} parent=1 // loop_footer_branch
      %22 = sbr.rel target = $region3
    $region8: #{tpu_custom_call.1} parent=1 // loop_exit
      _
    %2245 = vsyncpa [#allocation3], 1
    %s2246 = scalar_lea.sflag [#allocation3], 1
    %2247 = vsyncpa %s2246, 1

</llo_original>
